<compile_context>
chip_gen: v7x
topology: tpu7x:2x2x1
jax: 0.10.0
libtpu: 0.0.40
codegen_flags: <defaults>
</compile_context>

<pallas_src>
import jax
import jax.numpy as jnp
from jax.experimental import pallas as pl
from jax.experimental.pallas import tpu as pltpu

FOLD = 8  # batch rows folded into the lane axis


# --------------------------------- kernel ---------------------------------
def rk_resnet_kernel(sw_ref,             # SMEM (3,)  softmax(sum_weight)
                     x_ref,              # VMEM (TBF, FOLD*sol)          lane-dense
                     w1s_ref, b1s_ref,   # VMEM (3, FOLD*sol, FOLD*hp), (3, 1, FOLD*hp)
                     w2s_ref, b2s_ref,   # VMEM (3, FOLD*hp, FOLD*hp),  (3, 1, FOLD*hp)
                     w3s_ref,            # VMEM (3, FOLD*hp, FOLD*sol)
                     out_ref):           # VMEM (TBF, FOLD*sol)

    def res_block(xx, k):
        # ResNet.forward: y = sigmoid(layer1(x)); y = sigmoid(layer2(y)); return x + layer3(y)
        y = jax.nn.sigmoid(
            jnp.dot(xx, w1s_ref[k], preferred_element_type=jnp.float32) + b1s_ref[k])
        y = jax.nn.sigmoid(
            jnp.dot(y, w2s_ref[k], preferred_element_type=jnp.float32) + b2s_ref[k])
        return xx + jnp.dot(y, w3s_ref[k], preferred_element_type=jnp.float32)

    # Running accumulator: never keep y1, y2, y3 live at the same time.
    y = res_block(x_ref[...], 0)
    acc = sw_ref[0] * y
    y = res_block(y, 1)
    acc = acc + sw_ref[1] * y
    y = res_block(y, 2)
    out_ref[...] = acc + sw_ref[2] * y


# ------------------------------ weight packing ------------------------------
def _block_diag(w, n=FOLD):
    """(din, dout) -> (n*din, n*dout) with n copies of w on the diagonal."""
    din, dout = w.shape
    eye = jnp.eye(n, dtype=w.dtype)
    return jnp.einsum("ij,kl->ikjl", eye, w).reshape(n * din, n * dout)


def _pack_params(blocks, hp):
    """Pad hidden to hp and build 8-way block-diagonal, lane-dense weight stacks."""
    w1s, b1s, w2s, b2s, w3s = [], [], [], [], []
    for (w1, b1, w2, b2, w3) in blocks:
        sol, hid = w1.shape
        w1p = jnp.zeros((sol, hp), jnp.float32).at[:, :hid].set(w1.astype(jnp.float32))
        b1p = jnp.zeros((hp,), jnp.float32).at[:hid].set(b1.astype(jnp.float32))
        # Zero PAD ROWS in w2/w3 so sigmoid(0)=0.5 garbage in padded hidden lanes
        # never reaches a real output.
        w2p = jnp.zeros((hp, hp), jnp.float32).at[:hid, :hid].set(w2.astype(jnp.float32))
        b2p = jnp.zeros((hp,), jnp.float32).at[:hid].set(b2.astype(jnp.float32))
        w3p = jnp.zeros((hp, sol), jnp.float32).at[:hid, :].set(w3.astype(jnp.float32))
        w1s.append(_block_diag(w1p))
        w2s.append(_block_diag(w2p))
        w3s.append(_block_diag(w3p))
        b1s.append(jnp.tile(b1p, FOLD)[None, :])
        b2s.append(jnp.tile(b2p, FOLD)[None, :])
    return (jnp.stack(w1s), jnp.stack(b1s), jnp.stack(w2s),
            jnp.stack(b2s), jnp.stack(w3s))


# --------------------------------- wrapper ---------------------------------
def rk_resnet_forward(x, sum_weight, blocks, *, tbf=512):
    """x: (B, sol_dim) f32; sum_weight: (3,) f32;
    blocks: 3 tuples of (W1 (sol,hid), b1 (hid,), W2 (hid,hid), b2 (hid,), W3 (hid,sol)).
    tbf = batch tile measured in FOLDED rows (1 folded row = 8 original rows)."""
    B, sol_dim = x.shape
    hidden = blocks[0][0].shape[1]
    hp = -(-hidden // 16) * 16                     # 30 -> 32, so FOLD*hp = 256

    w1s, b1s, w2s, b2s, w3s = _pack_params(blocks, hp)
    # 3-way softmax: 3 scalars — do it in the wrapper, pass via SMEM.
    sw = jax.nn.softmax(sum_weight.astype(jnp.float32))

    # Fold 8 rows into lanes. Pad only to a multiple of 8 rows (and only if needed);
    # there is NO padding to the batch-tile size (Pallas masks the ragged edge block).
    xp = x.astype(jnp.float32)
    b8 = -(-B // FOLD) * FOLD
    if b8 != B:
        xp = jnp.pad(xp, ((0, b8 - B), (0, 0)))
    bf = b8 // FOLD
    xf = xp.reshape(bf, FOLD * sol_dim)            # (Bf, 128) lane-dense, free reshape

    # Tile choice: big tiles amortize per-step overhead; cap keeps double-buffered
    # tiles + resident weights well inside v5e's 16 MiB scoped-VMEM default; when the
    # whole batch fits in one tile, split it so both v7x TensorCores get a step.
    tbf = max(8, (min(int(tbf), 2048) // 8) * 8)
    if bf <= tbf:
        tbf = max(8, ((-(-bf // 2)) // 8) * 8) if bf >= 16 else bf
    grid = (pl.cdiv(bf, tbf),)

    lane = FOLD * sol_dim                          # 128 for sol_dim=16
    hlane = FOLD * hp                              # 256 for hidden=30->32
    const3 = lambda i: (0, 0, 0)                   # weights: same block every step

    out = pl.pallas_call(
        rk_resnet_kernel,
        out_shape=jax.ShapeDtypeStruct((bf, lane), jnp.float32),
        grid=grid,
        in_specs=[
            pl.BlockSpec(memory_space=pltpu.MemorySpace.SMEM),   # softmax weights (3,)
            pl.BlockSpec((tbf, lane), lambda i: (i, 0)),         # x tile
            pl.BlockSpec((3, lane, hlane), const3),              # W1' stack
            pl.BlockSpec((3, 1, hlane), const3),                 # b1' stack
            pl.BlockSpec((3, hlane, hlane), const3),             # W2' stack
            pl.BlockSpec((3, 1, hlane), const3),                 # b2' stack
            pl.BlockSpec((3, hlane, lane), const3),              # W3' stack
        ],
        out_specs=pl.BlockSpec((tbf, lane), lambda i: (i, 0)),
        compiler_params=pltpu.CompilerParams(
            dimension_semantics=("parallel",)),                  # shard steps over v7x TCs
    )(sw, xf, w1s, b1s, w2s, b2s, w3s)

    out = out.reshape(b8, sol_dim)
    return out if b8 == B else out[:B]


# ---------------- parameter init (deterministic, PyTorch-Linear-style uniform) --------------
def init_linear(key, fan_in, fan_out, bias=True):
    kw, kb = jax.random.split(key)
    bound = 1.0 / jnp.sqrt(jnp.float32(fan_in))
    w = jax.random.uniform(kw, (fan_in, fan_out), jnp.float32, -bound, bound)
    b = jax.random.uniform(kb, (fan_out,), jnp.float32, -bound, bound) if bias else None
    return w, b


def init_res_block(key, sol_dim, hidden):
    k1, k2, k3 = jax.random.split(key, 3)
    w1, b1 = init_linear(k1, sol_dim, hidden)               # layer1
    w2, b2 = init_linear(k2, hidden, hidden)                # layer2 (Linear+Sigmoid, M=3)
    w3, _ = init_linear(k3, hidden, sol_dim, bias=False)    # layer3, bias=False
    return (w1, b1, w2, b2, w3)


# ---------------- pure-JAX reference for verification ---------------
def ref_forward(x, sum_weight, blocks):
    def block(xx, p):
        w1, b1, w2, b2, w3 = p
        y = jax.nn.sigmoid(xx @ w1 + b1)
        y = jax.nn.sigmoid(y @ w2 + b2)
        return xx + y @ w3
    w = jax.nn.softmax(sum_weight)
    y1 = block(x, blocks[0])
    y2 = block(y1, blocks[1])
    y3 = block(y2, blocks[2])
    return w[0] * y1 + w[1] * y2 + w[2] * y3


if __name__ == "__main__":
    key = jax.random.PRNGKey(0)
    sol_dim, hidden = 16, 30   # RK_ResNet uses ResNet(sol_dim) with hidden=30, M=3

    kx, ksw, kb1, kb2, kb3, kx2 = jax.random.split(key, 6)
    sum_weight = jax.random.uniform(ksw, (3,), jnp.float32)   # torch.rand(3)
    blocks = [init_res_block(kb1, sol_dim, hidden),
              init_res_block(kb2, sol_dim, hidden),
              init_res_block(kb3, sol_dim, hidden)]

    # case 1: small batch, single grid step, batch divisible by the fold factor
    B1 = 16
    x1 = jax.random.normal(kx, (B1, sol_dim), jnp.float32)
    out1 = jax.block_until_ready(rk_resnet_forward(x1, sum_weight, blocks))
    ref1 = ref_forward(x1, sum_weight, blocks)
    assert out1.shape == (B1, sol_dim) and out1.dtype == jnp.float32
    assert jnp.allclose(out1, ref1, atol=1e-5, rtol=1e-5)

    # case 2: ragged batch (B % 8 != 0), multi-step grid with a partial edge block
    # (exercises the small fold pad, VMEM-resident weights, and masked edge writes)
    B2 = 300
    x2 = jax.random.normal(kx2, (B2, sol_dim), jnp.float32)
    out2 = jax.block_until_ready(rk_resnet_forward(x2, sum_weight, blocks, tbf=16))
    ref2 = ref_forward(x2, sum_weight, blocks)
    assert out2.shape == (B2, sol_dim) and out2.dtype == jnp.float32
    assert jnp.allclose(out2, ref2, atol=1e-5, rtol=1e-5)

    print("KERNEL_OK")
</pallas_src>

<mosaic_0001>
module attributes {stable_mosaic.version = 11 : i64} {
  func.func @rk_resnet_kernel(%arg0: i32, %arg1: memref<3xf32, #tpu.memory_space<smem>>, %arg2: memref<2x128xf32, #tpu.memory_space<vmem>>, %arg3: memref<3x128x256xf32, #tpu.memory_space<vmem>>, %arg4: memref<3x1x256xf32, #tpu.memory_space<vmem>>, %arg5: memref<3x256x256xf32, #tpu.memory_space<vmem>>, %arg6: memref<3x1x256xf32, #tpu.memory_space<vmem>>, %arg7: memref<3x256x128xf32, #tpu.memory_space<vmem>>, %arg8: memref<2x128xf32, #tpu.memory_space<vmem>>) attributes {dimension_semantics = [#tpu.dimension_semantics<parallel>], iteration_bounds = array<i64: 1>, scalar_prefetch = 0 : i64, scratch_operands = 0 : i64, tpu.core_type = #tpu.core_type<tc>, window_params = [{transform_indices = @transform_0, window_bounds = array<i64: 3>}, {transform_indices = @transform_1, window_bounds = array<i64: 2, 128>}, {pipeline_mode = #tpu.pipeline_mode<synchronous>, transform_indices = @transform_2, window_bounds = array<i64: 3, 128, 256>}, {pipeline_mode = #tpu.pipeline_mode<synchronous>, transform_indices = @transform_3, window_bounds = array<i64: 3, 1, 256>}, {pipeline_mode = #tpu.pipeline_mode<synchronous>, transform_indices = @transform_4, window_bounds = array<i64: 3, 256, 256>}, {pipeline_mode = #tpu.pipeline_mode<synchronous>, transform_indices = @transform_5, window_bounds = array<i64: 3, 1, 256>}, {pipeline_mode = #tpu.pipeline_mode<synchronous>, transform_indices = @transform_6, window_bounds = array<i64: 3, 256, 128>}, {transform_indices = @transform_7, window_bounds = array<i64: 2, 128>}]} {
    %c0 = arith.constant 0 : index
    %c0_0 = arith.constant 0 : index
    %0 = vector.load %arg2[%c0, %c0_0] : memref<2x128xf32, #tpu.memory_space<vmem>>, vector<2x128xf32>
    %c0_1 = arith.constant 0 : index
    %c0_2 = arith.constant 0 : index
    %c0_3 = arith.constant 0 : index
    %1 = vector.load %arg3[%c0_1, %c0_2, %c0_3] : memref<3x128x256xf32, #tpu.memory_space<vmem>>, vector<1x128x256xf32>
    %2 = vector.shape_cast %1 : vector<1x128x256xf32> to vector<128x256xf32>
    %cst = arith.constant dense<0.000000e+00> : vector<2x256xf32>
    %3 = tpu.matmul %0, %2, %cst {dimension_numbers = #tpu.dot_dimension_numbers<[1], [0], [0], [1], [0, 0, 1, 1], [], []>} : vector<2x128xf32>, vector<128x256xf32>, vector<2x256xf32> -> vector<2x256xf32>
    %c0_4 = arith.constant 0 : index
    %c0_5 = arith.constant 0 : index
    %c0_6 = arith.constant 0 : index
    %4 = vector.load %arg4[%c0_4, %c0_5, %c0_6] : memref<3x1x256xf32, #tpu.memory_space<vmem>>, vector<1x1x256xf32>
    %5 = vector.shape_cast %4 : vector<1x1x256xf32> to vector<1x256xf32>
    %6 = vector.broadcast %5 : vector<1x256xf32> to vector<2x256xf32>
    %7 = arith.addf %3, %6 : vector<2x256xf32>
    %8 = arith.negf %7 : vector<2x256xf32>
    %9 = math.exp %8 : vector<2x256xf32>
    %cst_7 = arith.constant 1.000000e+00 : f32
    %10 = vector.broadcast %cst_7 : f32 to vector<2x256xf32>
    %11 = arith.addf %10, %9 : vector<2x256xf32>
    %12 = arith.divf %10, %11 : vector<2x256xf32>
    %c0_8 = arith.constant 0 : index
    %c0_9 = arith.constant 0 : index
    %c0_10 = arith.constant 0 : index
    %13 = vector.load %arg5[%c0_8, %c0_9, %c0_10] : memref<3x256x256xf32, #tpu.memory_space<vmem>>, vector<1x256x256xf32>
    %14 = vector.shape_cast %13 : vector<1x256x256xf32> to vector<256x256xf32>
    %cst_11 = arith.constant dense<0.000000e+00> : vector<2x256xf32>
    %15 = tpu.matmul %12, %14, %cst_11 {dimension_numbers = #tpu.dot_dimension_numbers<[1], [0], [0], [1], [0, 0, 1, 1], [], []>} : vector<2x256xf32>, vector<256x256xf32>, vector<2x256xf32> -> vector<2x256xf32>
    %c0_12 = arith.constant 0 : index
    %c0_13 = arith.constant 0 : index
    %c0_14 = arith.constant 0 : index
    %16 = vector.load %arg6[%c0_12, %c0_13, %c0_14] : memref<3x1x256xf32, #tpu.memory_space<vmem>>, vector<1x1x256xf32>
    %17 = vector.shape_cast %16 : vector<1x1x256xf32> to vector<1x256xf32>
    %18 = vector.broadcast %17 : vector<1x256xf32> to vector<2x256xf32>
    %19 = arith.addf %15, %18 : vector<2x256xf32>
    %20 = arith.negf %19 : vector<2x256xf32>
    %21 = math.exp %20 : vector<2x256xf32>
    %cst_15 = arith.constant 1.000000e+00 : f32
    %22 = vector.broadcast %cst_15 : f32 to vector<2x256xf32>
    %23 = arith.addf %22, %21 : vector<2x256xf32>
    %24 = arith.divf %22, %23 : vector<2x256xf32>
    %c0_16 = arith.constant 0 : index
    %c0_17 = arith.constant 0 : index
    %c0_18 = arith.constant 0 : index
    %25 = vector.load %arg7[%c0_16, %c0_17, %c0_18] : memref<3x256x128xf32, #tpu.memory_space<vmem>>, vector<1x256x128xf32>
    %26 = vector.shape_cast %25 : vector<1x256x128xf32> to vector<256x128xf32>
    %cst_19 = arith.constant dense<0.000000e+00> : vector<2x128xf32>
    %27 = tpu.matmul %24, %26, %cst_19 {dimension_numbers = #tpu.dot_dimension_numbers<[1], [0], [0], [1], [0, 0, 1, 1], [], []>} : vector<2x256xf32>, vector<256x128xf32>, vector<2x128xf32> -> vector<2x128xf32>
    %28 = arith.addf %0, %27 : vector<2x128xf32>
    %c0_20 = arith.constant 0 : index
    %29 = memref.load %arg1[%c0_20] : memref<3xf32, #tpu.memory_space<smem>>
    %30 = vector.broadcast %29 : f32 to vector<2x128xf32>
    %31 = arith.mulf %30, %28 : vector<2x128xf32>
    %c1 = arith.constant 1 : index
    %c0_21 = arith.constant 0 : index
    %c0_22 = arith.constant 0 : index
    %32 = vector.load %arg3[%c1, %c0_21, %c0_22] : memref<3x128x256xf32, #tpu.memory_space<vmem>>, vector<1x128x256xf32>
    %33 = vector.shape_cast %32 : vector<1x128x256xf32> to vector<128x256xf32>
    %cst_23 = arith.constant dense<0.000000e+00> : vector<2x256xf32>
    %34 = tpu.matmul %28, %33, %cst_23 {dimension_numbers = #tpu.dot_dimension_numbers<[1], [0], [0], [1], [0, 0, 1, 1], [], []>} : vector<2x128xf32>, vector<128x256xf32>, vector<2x256xf32> -> vector<2x256xf32>
    %c1_24 = arith.constant 1 : index
    %c0_25 = arith.constant 0 : index
    %c0_26 = arith.constant 0 : index
    %35 = vector.load %arg4[%c1_24, %c0_25, %c0_26] : memref<3x1x256xf32, #tpu.memory_space<vmem>>, vector<1x1x256xf32>
    %36 = vector.shape_cast %35 : vector<1x1x256xf32> to vector<1x256xf32>
    %37 = vector.broadcast %36 : vector<1x256xf32> to vector<2x256xf32>
    %38 = arith.addf %34, %37 : vector<2x256xf32>
    %39 = arith.negf %38 : vector<2x256xf32>
    %40 = math.exp %39 : vector<2x256xf32>
    %cst_27 = arith.constant 1.000000e+00 : f32
    %41 = vector.broadcast %cst_27 : f32 to vector<2x256xf32>
    %42 = arith.addf %41, %40 : vector<2x256xf32>
    %43 = arith.divf %41, %42 : vector<2x256xf32>
    %c1_28 = arith.constant 1 : index
    %c0_29 = arith.constant 0 : index
    %c0_30 = arith.constant 0 : index
    %44 = vector.load %arg5[%c1_28, %c0_29, %c0_30] : memref<3x256x256xf32, #tpu.memory_space<vmem>>, vector<1x256x256xf32>
    %45 = vector.shape_cast %44 : vector<1x256x256xf32> to vector<256x256xf32>
    %cst_31 = arith.constant dense<0.000000e+00> : vector<2x256xf32>
    %46 = tpu.matmul %43, %45, %cst_31 {dimension_numbers = #tpu.dot_dimension_numbers<[1], [0], [0], [1], [0, 0, 1, 1], [], []>} : vector<2x256xf32>, vector<256x256xf32>, vector<2x256xf32> -> vector<2x256xf32>
    %c1_32 = arith.constant 1 : index
    %c0_33 = arith.constant 0 : index
    %c0_34 = arith.constant 0 : index
    %47 = vector.load %arg6[%c1_32, %c0_33, %c0_34] : memref<3x1x256xf32, #tpu.memory_space<vmem>>, vector<1x1x256xf32>
    %48 = vector.shape_cast %47 : vector<1x1x256xf32> to vector<1x256xf32>
    %49 = vector.broadcast %48 : vector<1x256xf32> to vector<2x256xf32>
    %50 = arith.addf %46, %49 : vector<2x256xf32>
    %51 = arith.negf %50 : vector<2x256xf32>
    %52 = math.exp %51 : vector<2x256xf32>
    %cst_35 = arith.constant 1.000000e+00 : f32
    %53 = vector.broadcast %cst_35 : f32 to vector<2x256xf32>
    %54 = arith.addf %53, %52 : vector<2x256xf32>
    %55 = arith.divf %53, %54 : vector<2x256xf32>
    %c1_36 = arith.constant 1 : index
    %c0_37 = arith.constant 0 : index
    %c0_38 = arith.constant 0 : index
    %56 = vector.load %arg7[%c1_36, %c0_37, %c0_38] : memref<3x256x128xf32, #tpu.memory_space<vmem>>, vector<1x256x128xf32>
    %57 = vector.shape_cast %56 : vector<1x256x128xf32> to vector<256x128xf32>
    %cst_39 = arith.constant dense<0.000000e+00> : vector<2x128xf32>
    %58 = tpu.matmul %55, %57, %cst_39 {dimension_numbers = #tpu.dot_dimension_numbers<[1], [0], [0], [1], [0, 0, 1, 1], [], []>} : vector<2x256xf32>, vector<256x128xf32>, vector<2x128xf32> -> vector<2x128xf32>
    %59 = arith.addf %28, %58 : vector<2x128xf32>
    %c1_40 = arith.constant 1 : index
    %60 = memref.load %arg1[%c1_40] : memref<3xf32, #tpu.memory_space<smem>>
    %61 = vector.broadcast %60 : f32 to vector<2x128xf32>
    %62 = arith.mulf %61, %59 : vector<2x128xf32>
    %63 = arith.addf %31, %62 : vector<2x128xf32>
    %c2 = arith.constant 2 : index
    %c0_41 = arith.constant 0 : index
    %c0_42 = arith.constant 0 : index
    %64 = vector.load %arg3[%c2, %c0_41, %c0_42] : memref<3x128x256xf32, #tpu.memory_space<vmem>>, vector<1x128x256xf32>
    %65 = vector.shape_cast %64 : vector<1x128x256xf32> to vector<128x256xf32>
    %cst_43 = arith.constant dense<0.000000e+00> : vector<2x256xf32>
    %66 = tpu.matmul %59, %65, %cst_43 {dimension_numbers = #tpu.dot_dimension_numbers<[1], [0], [0], [1], [0, 0, 1, 1], [], []>} : vector<2x128xf32>, vector<128x256xf32>, vector<2x256xf32> -> vector<2x256xf32>
    %c2_44 = arith.constant 2 : index
    %c0_45 = arith.constant 0 : index
    %c0_46 = arith.constant 0 : index
    %67 = vector.load %arg4[%c2_44, %c0_45, %c0_46] : memref<3x1x256xf32, #tpu.memory_space<vmem>>, vector<1x1x256xf32>
    %68 = vector.shape_cast %67 : vector<1x1x256xf32> to vector<1x256xf32>
    %69 = vector.broadcast %68 : vector<1x256xf32> to vector<2x256xf32>
    %70 = arith.addf %66, %69 : vector<2x256xf32>
    %71 = arith.negf %70 : vector<2x256xf32>
    %72 = math.exp %71 : vector<2x256xf32>
    %cst_47 = arith.constant 1.000000e+00 : f32
    %73 = vector.broadcast %cst_47 : f32 to vector<2x256xf32>
    %74 = arith.addf %73, %72 : vector<2x256xf32>
    %75 = arith.divf %73, %74 : vector<2x256xf32>
    %c2_48 = arith.constant 2 : index
    %c0_49 = arith.constant 0 : index
    %c0_50 = arith.constant 0 : index
    %76 = vector.load %arg5[%c2_48, %c0_49, %c0_50] : memref<3x256x256xf32, #tpu.memory_space<vmem>>, vector<1x256x256xf32>
    %77 = vector.shape_cast %76 : vector<1x256x256xf32> to vector<256x256xf32>
    %cst_51 = arith.constant dense<0.000000e+00> : vector<2x256xf32>
    %78 = tpu.matmul %75, %77, %cst_51 {dimension_numbers = #tpu.dot_dimension_numbers<[1], [0], [0], [1], [0, 0, 1, 1], [], []>} : vector<2x256xf32>, vector<256x256xf32>, vector<2x256xf32> -> vector<2x256xf32>
    %c2_52 = arith.constant 2 : index
    %c0_53 = arith.constant 0 : index
    %c0_54 = arith.constant 0 : index
    %79 = vector.load %arg6[%c2_52, %c0_53, %c0_54] : memref<3x1x256xf32, #tpu.memory_space<vmem>>, vector<1x1x256xf32>
    %80 = vector.shape_cast %79 : vector<1x1x256xf32> to vector<1x256xf32>
    %81 = vector.broadcast %80 : vector<1x256xf32> to vector<2x256xf32>
    %82 = arith.addf %78, %81 : vector<2x256xf32>
    %83 = arith.negf %82 : vector<2x256xf32>
    %84 = math.exp %83 : vector<2x256xf32>
    %cst_55 = arith.constant 1.000000e+00 : f32
    %85 = vector.broadcast %cst_55 : f32 to vector<2x256xf32>
    %86 = arith.addf %85, %84 : vector<2x256xf32>
    %87 = arith.divf %85, %86 : vector<2x256xf32>
    %c2_56 = arith.constant 2 : index
    %c0_57 = arith.constant 0 : index
    %c0_58 = arith.constant 0 : index
    %88 = vector.load %arg7[%c2_56, %c0_57, %c0_58] : memref<3x256x128xf32, #tpu.memory_space<vmem>>, vector<1x256x128xf32>
    %89 = vector.shape_cast %88 : vector<1x256x128xf32> to vector<256x128xf32>
    %cst_59 = arith.constant dense<0.000000e+00> : vector<2x128xf32>
    %90 = tpu.matmul %87, %89, %cst_59 {dimension_numbers = #tpu.dot_dimension_numbers<[1], [0], [0], [1], [0, 0, 1, 1], [], []>} : vector<2x256xf32>, vector<256x128xf32>, vector<2x128xf32> -> vector<2x128xf32>
    %91 = arith.addf %59, %90 : vector<2x128xf32>
    %c2_60 = arith.constant 2 : index
    %92 = memref.load %arg1[%c2_60] : memref<3xf32, #tpu.memory_space<smem>>
    %93 = vector.broadcast %92 : f32 to vector<2x128xf32>
    %94 = arith.mulf %93, %91 : vector<2x128xf32>
    %95 = arith.addf %63, %94 : vector<2x128xf32>
    %c0_61 = arith.constant 0 : index
    %c0_62 = arith.constant 0 : index
    %96 = vector.load %arg8[%c0_61, %c0_62] : memref<2x128xf32, #tpu.memory_space<vmem>>, vector<2x128xf32>
    tpu.vector_store %arg8[%c0_61, %c0_62], %95 {strides = array<i32>} : memref<2x128xf32, #tpu.memory_space<vmem>>, vector<2x128xf32>,
    return
  }
  func.func @transform_0(%arg0: i32) -> i32 {
    %c0_i32 = arith.constant 0 : i32
    %c0_i32_0 = arith.constant 0 : i32
    return %c0_i32 : i32
  }
  func.func @transform_1(%arg0: i32) -> (i32, i32) {
    %c0_i32 = arith.constant 0 : i32
    %c0_i32_0 = arith.constant 0 : i32
    return %arg0, %c0_i32 : i32, i32
  }
  func.func @transform_2(%arg0: i32) -> (i32, i32, i32) {
    %c0_i32 = arith.constant 0 : i32
    %c0_i32_0 = arith.constant 0 : i32
    %c0_i32_1 = arith.constant 0 : i32
    %c0_i32_2 = arith.constant 0 : i32
    return %c0_i32, %c0_i32_0, %c0_i32_1 : i32, i32, i32
  }
  func.func @transform_3(%arg0: i32) -> (i32, i32, i32) {
    %c0_i32 = arith.constant 0 : i32
    %c0_i32_0 = arith.constant 0 : i32
    %c0_i32_1 = arith.constant 0 : i32
    %c0_i32_2 = arith.constant 0 : i32
    return %c0_i32, %c0_i32_0, %c0_i32_1 : i32, i32, i32
  }
  func.func @transform_4(%arg0: i32) -> (i32, i32, i32) {
    %c0_i32 = arith.constant 0 : i32
    %c0_i32_0 = arith.constant 0 : i32
    %c0_i32_1 = arith.constant 0 : i32
    %c0_i32_2 = arith.constant 0 : i32
    return %c0_i32, %c0_i32_0, %c0_i32_1 : i32, i32, i32
  }
  func.func @transform_5(%arg0: i32) -> (i32, i32, i32) {
    %c0_i32 = arith.constant 0 : i32
    %c0_i32_0 = arith.constant 0 : i32
    %c0_i32_1 = arith.constant 0 : i32
    %c0_i32_2 = arith.constant 0 : i32
    return %c0_i32, %c0_i32_0, %c0_i32_1 : i32, i32, i32
  }
  func.func @transform_6(%arg0: i32) -> (i32, i32, i32) {
    %c0_i32 = arith.constant 0 : i32
    %c0_i32_0 = arith.constant 0 : i32
    %c0_i32_1 = arith.constant 0 : i32
    %c0_i32_2 = arith.constant 0 : i32
    return %c0_i32, %c0_i32_0, %c0_i32_1 : i32, i32, i32
  }
  func.func @transform_7(%arg0: i32) -> (i32, i32) {
    %c0_i32 = arith.constant 0 : i32
    %c0_i32_0 = arith.constant 0 : i32
    return %arg0, %c0_i32 : i32, i32
  }
}

</mosaic_0001>

<llo_original>
// kernel: tpu_custom_call.1
$region0: #{tpu_custom_call.1}
  #allocation0 [shape = 'u32[]', space=smem, size = 0x4, offset = 0x4, fixed_abs, tag = 'smem constant byte address 0x4 - core index']
  #allocation1 [shape = 'u32[144,128]{1,0:T(1,128)}', space=vmem, size = 0x12000, scoped, tag = 'internal scratch']
  %s0 = inlined_call_operand.hbm [shape: f32[3], index: 0, kind: input, shape index: {}]
  %s1 = inlined_call_operand.vmem [shape: f32[2,128], index: 1, kind: input, shape index: {}]
  %s2 = inlined_call_operand.hbm [shape: f32[3,128,256], index: 2, kind: input, shape index: {}]
  %s3 = inlined_call_operand.vmem [shape: f32[3,1,256], index: 3, kind: input, shape index: {}]
  %s4 = inlined_call_operand.hbm [shape: f32[3,256,256], index: 4, kind: input, shape index: {}]
  %s5 = inlined_call_operand.vmem [shape: f32[3,1,256], index: 5, kind: input, shape index: {}]
  %s6 = inlined_call_operand.hbm [shape: f32[3,256,128], index: 6, kind: input, shape index: {}]
  %s7 = inlined_call_operand.hbm [shape: f32[2,128], index: 7, kind: output, shape index: {}]
  %s8 = sld [smem:[#allocation0]]
  $region54: #{tpu_custom_call.1} parent=0
    _
  %s10 = ssub.s32 1, %s8
  %s11 = scalar_select 0, %s10, %s8
  $region1: #{tpu_custom_call.1} parent=0
    #allocation2 [shape = 'u8[512]{0}', space=smem, size = 0x200, scoped, tag = 'input window, operand 0, single buffered']
    #allocation3 [shape = 's32[1]{0}', space=sflag, size = 0x4, scoped, tag = 'scoped memory for tpu_custom_call.1']
    #allocation4 [shape = 's32[1]{0}', space=sflag, size = 0x4, scoped, tag = 'scoped memory for tpu_custom_call.1']
    #allocation5 [shape = 's32[1]{0}', space=sflag, size = 0x4, scoped, tag = 'scoped memory for tpu_custom_call.1']
    #allocation6 [shape = 'u8[393216]{0}', space=vmem, size = 0x60000, scoped, tag = 'input window, operand 2, single buffered']
    #allocation7 [shape = 'u8[786432]{0}', space=vmem, size = 0xc0000, scoped, tag = 'input window, operand 4, single buffered']
    #allocation8 [shape = 's32[1]{0}', space=sflag, size = 0x4, scoped, tag = 'scoped memory for tpu_custom_call.1']
    #allocation9 [shape = 'u8[393216]{0}', space=vmem, size = 0x60000, scoped, tag = 'input window, operand 6, single buffered']
    #allocation10 [shape = 'u8[1024]{0}', space=vmem, size = 0x400, scoped, tag = 'output window, operand 0, single buffered']
    %12 = vsyncpa [#allocation5], 0
    %13 = vsyncpa [#allocation3], 0
    %14 = vsyncpa [#allocation8], 0
    %15 = vsyncpa [#allocation4], 0
    // Predicated region
    $region2: #{tpu_custom_call.1} parent=1 // pred_check
      _
    $region3: #{tpu_custom_call.1} parent=1 // pred_check_branch
      %17 = sbr.rel (0) target = $region5
    $region4: #{tpu_custom_call.1} parent=1 // pred_region
      %s19 = ssub.s32 16, 16
      %20 = vsyncadd [#allocation5], %s19
      %23 = dma.hbm_to_smem %s0, 16, [#allocation2], [#allocation5]
    $region5: #{tpu_custom_call.1} parent=1 // pred_fallthru
      _
    // Predicated region
    $region6: #{tpu_custom_call.1} parent=1 // pred_check
      _
    $region7: #{tpu_custom_call.1} parent=1 // pred_check_branch
      %25 = sbr.rel (0) target = $region9
    $region8: #{tpu_custom_call.1} parent=1 // pred_region
      _
    $region9: #{tpu_custom_call.1} parent=1 // pred_fallthru
      _
    // Predicated region
    $region10: #{tpu_custom_call.1} parent=1 // pred_check
      _
    $region11: #{tpu_custom_call.1} parent=1 // pred_check_branch
      %27 = sbr.rel (0) target = $region13
    $region12: #{tpu_custom_call.1} parent=1 // pred_region
      %s29 = ssub.s32 12288, 12288
      %30 = vsyncadd [#allocation3], %s29
      %s31 = sshll.u32 [#allocation6], 4
      %s32 = int_to_ptr.vmem [resolvable:$true] %s31
      %37 = dma.hbm_to_vmem [thread:$0]  %s2, 12288, %s32, [#allocation3], 256, 256, 16
    $region13: #{tpu_custom_call.1} parent=1 // pred_fallthru
      _
    // Predicated region
    $region14: #{tpu_custom_call.1} parent=1 // pred_check
      _
    $region15: #{tpu_custom_call.1} parent=1 // pred_check_branch
      %39 = sbr.rel (0) target = $region17
    $region16: #{tpu_custom_call.1} parent=1 // pred_region
      _
    $region17: #{tpu_custom_call.1} parent=1 // pred_fallthru
      _
    // Predicated region
    $region18: #{tpu_custom_call.1} parent=1 // pred_check
      _
    $region19: #{tpu_custom_call.1} parent=1 // pred_check_branch
      %41 = sbr.rel (0) target = $region21
    $region20: #{tpu_custom_call.1} parent=1 // pred_region
      %s43 = ssub.s32 24576, 24576
      %44 = vsyncadd [#allocation8], %s43
      %s45 = sshll.u32 [#allocation7], 4
      %s46 = int_to_ptr.vmem [resolvable:$true] %s45
      %51 = dma.hbm_to_vmem [thread:$0]  %s4, 24576, %s46, [#allocation8], 256, 256, 16
    $region21: #{tpu_custom_call.1} parent=1 // pred_fallthru
      _
    // Predicated region
    $region22: #{tpu_custom_call.1} parent=1 // pred_check
      _
    $region23: #{tpu_custom_call.1} parent=1 // pred_check_branch
      %53 = sbr.rel (0) target = $region25
    $region24: #{tpu_custom_call.1} parent=1 // pred_region
      _
    $region25: #{tpu_custom_call.1} parent=1 // pred_fallthru
      _
    // Predicated region
    $region26: #{tpu_custom_call.1} parent=1 // pred_check
      _
    $region27: #{tpu_custom_call.1} parent=1 // pred_check_branch
      %55 = sbr.rel (0) target = $region29
    $region28: #{tpu_custom_call.1} parent=1 // pred_region
      %s57 = ssub.s32 12288, 12288
      %58 = vsyncadd [#allocation8], %s57
      %s59 = sshll.u32 [#allocation9], 4
      %s60 = int_to_ptr.vmem [resolvable:$true] %s59
      %65 = dma.hbm_to_vmem [thread:$0]  %s6, 12288, %s60, [#allocation8], 128, 128, 8
    $region29: #{tpu_custom_call.1} parent=1 // pred_fallthru
      _
    // Predicated region
    $region30: #{tpu_custom_call.1} parent=1 // pred_check
      _
    $region31: #{tpu_custom_call.1} parent=1 // pred_check_branch
      %67 = sbr.rel (0) target = $region33
    $region32: #{tpu_custom_call.1} parent=1 // pred_region
      %68 = dma.done [#allocation5], 16
    $region33: #{tpu_custom_call.1} parent=1 // pred_fallthru
      _
    // Predicated region
    $region34: #{tpu_custom_call.1} parent=1 // pred_check
      _
    $region35: #{tpu_custom_call.1} parent=1 // pred_check_branch
      %70 = sbr.rel (0) target = $region37
    $region36: #{tpu_custom_call.1} parent=1 // pred_region
      %71 = dma.done [#allocation3], 12288
    $region37: #{tpu_custom_call.1} parent=1 // pred_fallthru
      _
    // Predicated region
    $region38: #{tpu_custom_call.1} parent=1 // pred_check
      _
    $region39: #{tpu_custom_call.1} parent=1 // pred_check_branch
      %73 = sbr.rel (0) target = $region41
    $region40: #{tpu_custom_call.1} parent=1 // pred_region
      %74 = dma.done [#allocation8], 24576
    $region41: #{tpu_custom_call.1} parent=1 // pred_fallthru
      _
    // Predicated region
    $region42: #{tpu_custom_call.1} parent=1 // pred_check
      _
    $region43: #{tpu_custom_call.1} parent=1 // pred_check_branch
      %76 = sbr.rel (0) target = $region45
    $region44: #{tpu_custom_call.1} parent=1 // pred_region
      %77 = dma.done [#allocation8], 12288
    $region45: #{tpu_custom_call.1} parent=1 // pred_fallthru
      _
    %78 = sfence
    %v79 = vld [vmem:[%s1] sm:$0x3]
    %v80 = vld [vmem:[#allocation6] sm:$0xff]
    %v81 = vld [vmem:[#allocation6 + $0x8] sm:$0xff]
    %v82 = vld [vmem:[#allocation6 + $0x10] sm:$0xff]
    %v83 = vld [vmem:[#allocation6 + $0x18] sm:$0xff]
    %v84 = vld [vmem:[#allocation6 + $0x20] sm:$0xff]
    %v85 = vld [vmem:[#allocation6 + $0x28] sm:$0xff]
    %v86 = vld [vmem:[#allocation6 + $0x30] sm:$0xff]
    %v87 = vld [vmem:[#allocation6 + $0x38] sm:$0xff]
    %v88 = vld [vmem:[#allocation6 + $0x40] sm:$0xff]
    %v89 = vld [vmem:[#allocation6 + $0x48] sm:$0xff]
    %v90 = vld [vmem:[#allocation6 + $0x50] sm:$0xff]
    %v91 = vld [vmem:[#allocation6 + $0x58] sm:$0xff]
    %v92 = vld [vmem:[#allocation6 + $0x60] sm:$0xff]
    %v93 = vld [vmem:[#allocation6 + $0x68] sm:$0xff]
    %v94 = vld [vmem:[#allocation6 + $0x70] sm:$0xff]
    %v95 = vld [vmem:[#allocation6 + $0x78] sm:$0xff]
    %v96 = vld [vmem:[#allocation6 + $0x80] sm:$0xff]
    %v97 = vld [vmem:[#allocation6 + $0x88] sm:$0xff]
    %v98 = vld [vmem:[#allocation6 + $0x90] sm:$0xff]
    %v99 = vld [vmem:[#allocation6 + $0x98] sm:$0xff]
    %v100 = vld [vmem:[#allocation6 + $0xa0] sm:$0xff]
    %v101 = vld [vmem:[#allocation6 + $0xa8] sm:$0xff]
    %v102 = vld [vmem:[#allocation6 + $0xb0] sm:$0xff]
    %v103 = vld [vmem:[#allocation6 + $0xb8] sm:$0xff]
    %v104 = vld [vmem:[#allocation6 + $0xc0] sm:$0xff]
    %v105 = vld [vmem:[#allocation6 + $0xc8] sm:$0xff]
    %v106 = vld [vmem:[#allocation6 + $0xd0] sm:$0xff]
    %v107 = vld [vmem:[#allocation6 + $0xd8] sm:$0xff]
    %v108 = vld [vmem:[#allocation6 + $0xe0] sm:$0xff]
    %v109 = vld [vmem:[#allocation6 + $0xe8] sm:$0xff]
    %v110 = vld [vmem:[#allocation6 + $0xf0] sm:$0xff]
    %v111 = vld [vmem:[#allocation6 + $0xf8] sm:$0xff]
    %v112 = vld [vmem:[%s3] sm:$0x3]
    %v114 = vlaneseq
    %v115 = vshrl.u32 %v114, 7
    %v116 = vsub.s32 0, %v115
    %v117 = vrot.slane %v112, %v116
    %v118 = vlaneseq
    %v119 = vshrl.u32 %v118, 7
    %v120 = vsub.s32 1, %v119
    %v121 = vrot.slane %v112, %v120
    %124 = vmatprep.subr.mxu0 %v81
    %125 = vmatpush1.msra.mxu0 %v80
    %126 = vmatprep.subr.mxu0 %v83
    %127 = vmatpush1.msra.mxu0 %v82
    %128 = vmatprep.subr.mxu0 %v85
    %129 = vmatpush1.msra.mxu0 %v84
    %130 = vmatprep.subr.mxu0 %v87
    %131 = vmatpush1.msra.mxu0 %v86
    %132 = vmatprep.subr.mxu0 %v89
    %133 = vmatpush1.msra.mxu0 %v88
    %134 = vmatprep.subr.mxu0 %v91
    %135 = vmatpush1.msra.mxu0 %v90
    %136 = vmatprep.subr.mxu0 %v93
    %137 = vmatpush1.msra.mxu0 %v92
    %138 = vmatprep.subr.mxu0 %v95
    %139 = vmatpush1.msra.mxu0 %v94
    %140 = vmatprep.subr.mxu0 %v97
    %141 = vmatpush1.msra.mxu0 %v96
    %142 = vmatprep.subr.mxu0 %v99
    %143 = vmatpush1.msra.mxu0 %v98
    %144 = vmatprep.subr.mxu0 %v101
    %145 = vmatpush1.msra.mxu0 %v100
    %146 = vmatprep.subr.mxu0 %v103
    %147 = vmatpush1.msra.mxu0 %v102
    %148 = vmatprep.subr.mxu0 %v105
    %149 = vmatpush1.msra.mxu0 %v104
    %150 = vmatprep.subr.mxu0 %v107
    %151 = vmatpush1.msra.mxu0 %v106
    %152 = vmatprep.subr.mxu0 %v109
    %153 = vmatpush1.msra.mxu0 %v108
    %154 = vmatprep.subr.mxu0 %v111
    %155 = vmatpush1.msra.mxu0 %v110
    %156 = vmatprep.subr.mxu0 0.0
    %157 = vmatpush1.msra.mxu0 0.0
    %158 = vmatprep.subr.mxu0 0.0
    %159 = vmatpush1.msra.mxu0 0.0
    %160 = vmatprep.subr.mxu0 0.0
    %161 = vmatpush1.msra.mxu0 0.0
    %162 = vmatprep.subr.mxu0 0.0
    %163 = vmatpush1.msra.mxu0 0.0
    %164 = vmatprep.subr.mxu0 0.0
    %165 = vmatpush1.msra.mxu0 0.0
    %166 = vmatprep.subr.mxu0 0.0
    %167 = vmatpush1.msra.mxu0 0.0
    %168 = vmatprep.subr.mxu0 0.0
    %169 = vmatpush1.msra.mxu0 0.0
    %170 = vmatprep.subr.mxu0 0.0
    %171 = vmatpush1.msra.mxu0 0.0
    %172 = vmatprep.subr.mxu0 0.0
    %173 = vmatpush1.msra.mxu0 0.0
    %174 = vmatprep.subr.mxu0 0.0
    %175 = vmatpush1.msra.mxu0 0.0
    %176 = vmatprep.subr.mxu0 0.0
    %177 = vmatpush1.msra.mxu0 0.0
    %178 = vmatprep.subr.mxu0 0.0
    %179 = vmatpush1.msra.mxu0 0.0
    %180 = vmatprep.subr.mxu0 0.0
    %181 = vmatpush1.msra.mxu0 0.0
    %182 = vmatprep.subr.mxu0 0.0
    %183 = vmatpush1.msra.mxu0 0.0
    %184 = vmatprep.subr.mxu0 0.0
    %185 = vmatpush1.msra.mxu0 0.0
    %186 = vmatprep.subr.mxu0 0.0
    %187 = vmatpush1.msra.mxu0 0.0
    %188 = vmatprep.mubr.f32.mxu0 0.0
    %189 = vmatmul.mubr.f32.gmra.mrb[0].mxu0 %v79
    %v190 = vpop.f32.mrb[0].mxu0
    %v191 = vadd.f32 %v117, %v190
    %v192 = vpop.f32.mrb[0].mxu0
    %v193 = vadd.f32 %v121, %v192
    %194 = vdwg.mxu0
    %v195 = vxor.u32 %v191, 2147483648
    %v196 = vxor.u32 %v193, 2147483648
    %v197 = vmul.f32 %v195, 1.442695
    %v198 = vpow.pop %v197
    %v199 = vmul.f32 %v196, 1.442695
    %v200 = vpow.pop %v199
    %v201 = vadd.f32 %v198, 1.0
    %v202 = vadd.f32 %v200, 1.0
    %v203 = vrcp.pop %v201
    %v204 = vmul.f32 1.0, %v203
    %v205 = vrcp.pop %v202
    %v206 = vmul.f32 1.0, %v205
    %v207 = vld [vmem:[#allocation7] sm:$0xff]
    %v208 = vld [vmem:[#allocation7 + $0x8] sm:$0xff]
    %v209 = vld [vmem:[#allocation7 + $0x10] sm:$0xff]
    %v210 = vld [vmem:[#allocation7 + $0x18] sm:$0xff]
    %v211 = vld [vmem:[#allocation7 + $0x20] sm:$0xff]
    %v212 = vld [vmem:[#allocation7 + $0x28] sm:$0xff]
    %v213 = vld [vmem:[#allocation7 + $0x30] sm:$0xff]
    %v214 = vld [vmem:[#allocation7 + $0x38] sm:$0xff]
    %v215 = vld [vmem:[#allocation7 + $0x40] sm:$0xff]
    %v216 = vld [vmem:[#allocation7 + $0x48] sm:$0xff]
    %v217 = vld [vmem:[#allocation7 + $0x50] sm:$0xff]
    %v218 = vld [vmem:[#allocation7 + $0x58] sm:$0xff]
    %v219 = vld [vmem:[#allocation7 + $0x60] sm:$0xff]
    %v220 = vld [vmem:[#allocation7 + $0x68] sm:$0xff]
    %v221 = vld [vmem:[#allocation7 + $0x70] sm:$0xff]
    %v222 = vld [vmem:[#allocation7 + $0x78] sm:$0xff]
    %v223 = vld [vmem:[#allocation7 + $0x80] sm:$0xff]
    %v224 = vld [vmem:[#allocation7 + $0x88] sm:$0xff]
    %v225 = vld [vmem:[#allocation7 + $0x90] sm:$0xff]
    %v226 = vld [vmem:[#allocation7 + $0x98] sm:$0xff]
    %v227 = vld [vmem:[#allocation7 + $0xa0] sm:$0xff]
    %v228 = vld [vmem:[#allocation7 + $0xa8] sm:$0xff]
    %v229 = vld [vmem:[#allocation7 + $0xb0] sm:$0xff]
    %v230 = vld [vmem:[#allocation7 + $0xb8] sm:$0xff]
    %v231 = vld [vmem:[#allocation7 + $0xc0] sm:$0xff]
    %v232 = vld [vmem:[#allocation7 + $0xc8] sm:$0xff]
    %v233 = vld [vmem:[#allocation7 + $0xd0] sm:$0xff]
    %v234 = vld [vmem:[#allocation7 + $0xd8] sm:$0xff]
    %v235 = vld [vmem:[#allocation7 + $0xe0] sm:$0xff]
    %v236 = vld [vmem:[#allocation7 + $0xe8] sm:$0xff]
    %v237 = vld [vmem:[#allocation7 + $0xf0] sm:$0xff]
    %v238 = vld [vmem:[#allocation7 + $0xf8] sm:$0xff]
    %v239 = vld [vmem:[#allocation7 + $0x100] sm:$0xff]
    %v240 = vld [vmem:[#allocation7 + $0x108] sm:$0xff]
    %v241 = vld [vmem:[#allocation7 + $0x110] sm:$0xff]
    %v242 = vld [vmem:[#allocation7 + $0x118] sm:$0xff]
    %v243 = vld [vmem:[#allocation7 + $0x120] sm:$0xff]
    %v244 = vld [vmem:[#allocation7 + $0x128] sm:$0xff]
    %v245 = vld [vmem:[#allocation7 + $0x130] sm:$0xff]
    %v246 = vld [vmem:[#allocation7 + $0x138] sm:$0xff]
    %v247 = vld [vmem:[#allocation7 + $0x140] sm:$0xff]
    %v248 = vld [vmem:[#allocation7 + $0x148] sm:$0xff]
    %v249 = vld [vmem:[#allocation7 + $0x150] sm:$0xff]
    %v250 = vld [vmem:[#allocation7 + $0x158] sm:$0xff]
    %v251 = vld [vmem:[#allocation7 + $0x160] sm:$0xff]
    %v252 = vld [vmem:[#allocation7 + $0x168] sm:$0xff]
    %v253 = vld [vmem:[#allocation7 + $0x170] sm:$0xff]
    %v254 = vld [vmem:[#allocation7 + $0x178] sm:$0xff]
    %v255 = vld [vmem:[#allocation7 + $0x180] sm:$0xff]
    %v256 = vld [vmem:[#allocation7 + $0x188] sm:$0xff]
    %v257 = vld [vmem:[#allocation7 + $0x190] sm:$0xff]
    %v258 = vld [vmem:[#allocation7 + $0x198] sm:$0xff]
    %v259 = vld [vmem:[#allocation7 + $0x1a0] sm:$0xff]
    %v260 = vld [vmem:[#allocation7 + $0x1a8] sm:$0xff]
    %v261 = vld [vmem:[#allocation7 + $0x1b0] sm:$0xff]
    %v262 = vld [vmem:[#allocation7 + $0x1b8] sm:$0xff]
    %v263 = vld [vmem:[#allocation7 + $0x1c0] sm:$0xff]
    %v264 = vld [vmem:[#allocation7 + $0x1c8] sm:$0xff]
    %v265 = vld [vmem:[#allocation7 + $0x1d0] sm:$0xff]
    %v266 = vld [vmem:[#allocation7 + $0x1d8] sm:$0xff]
    %v267 = vld [vmem:[#allocation7 + $0x1e0] sm:$0xff]
    %v268 = vld [vmem:[#allocation7 + $0x1e8] sm:$0xff]
    %v269 = vld [vmem:[#allocation7 + $0x1f0] sm:$0xff]
    %v270 = vld [vmem:[#allocation7 + $0x1f8] sm:$0xff]
    %v271 = vld [vmem:[%s5] sm:$0x3]
    %v273 = vlaneseq
    %v274 = vshrl.u32 %v273, 7
    %v275 = vsub.s32 0, %v274
    %v276 = vrot.slane %v271, %v275
    %v277 = vlaneseq
    %v278 = vshrl.u32 %v277, 7
    %v279 = vsub.s32 1, %v278
    %v280 = vrot.slane %v271, %v279
    %283 = vmatprep.subr.mxu0 %v208
    %284 = vmatpush1.msra.mxu0 %v207
    %285 = vmatprep.subr.mxu0 %v210
    %286 = vmatpush1.msra.mxu0 %v209
    %287 = vmatprep.subr.mxu0 %v212
    %288 = vmatpush1.msra.mxu0 %v211
    %289 = vmatprep.subr.mxu0 %v214
    %290 = vmatpush1.msra.mxu0 %v213
    %291 = vmatprep.subr.mxu0 %v216
    %292 = vmatpush1.msra.mxu0 %v215
    %293 = vmatprep.subr.mxu0 %v218
    %294 = vmatpush1.msra.mxu0 %v217
    %295 = vmatprep.subr.mxu0 %v220
    %296 = vmatpush1.msra.mxu0 %v219
    %297 = vmatprep.subr.mxu0 %v222
    %298 = vmatpush1.msra.mxu0 %v221
    %299 = vmatprep.subr.mxu0 %v224
    %300 = vmatpush1.msra.mxu0 %v223
    %301 = vmatprep.subr.mxu0 %v226
    %302 = vmatpush1.msra.mxu0 %v225
    %303 = vmatprep.subr.mxu0 %v228
    %304 = vmatpush1.msra.mxu0 %v227
    %305 = vmatprep.subr.mxu0 %v230
    %306 = vmatpush1.msra.mxu0 %v229
    %307 = vmatprep.subr.mxu0 %v232
    %308 = vmatpush1.msra.mxu0 %v231
    %309 = vmatprep.subr.mxu0 %v234
    %310 = vmatpush1.msra.mxu0 %v233
    %311 = vmatprep.subr.mxu0 %v236
    %312 = vmatpush1.msra.mxu0 %v235
    %313 = vmatprep.subr.mxu0 %v238
    %314 = vmatpush1.msra.mxu0 %v237
    %315 = vmatprep.subr.mxu0 %v240
    %316 = vmatpush1.msra.mxu0 %v239
    %317 = vmatprep.subr.mxu0 %v242
    %318 = vmatpush1.msra.mxu0 %v241
    %319 = vmatprep.subr.mxu0 %v244
    %320 = vmatpush1.msra.mxu0 %v243
    %321 = vmatprep.subr.mxu0 %v246
    %322 = vmatpush1.msra.mxu0 %v245
    %323 = vmatprep.subr.mxu0 %v248
    %324 = vmatpush1.msra.mxu0 %v247
    %325 = vmatprep.subr.mxu0 %v250
    %326 = vmatpush1.msra.mxu0 %v249
    %327 = vmatprep.subr.mxu0 %v252
    %328 = vmatpush1.msra.mxu0 %v251
    %329 = vmatprep.subr.mxu0 %v254
    %330 = vmatpush1.msra.mxu0 %v253
    %331 = vmatprep.subr.mxu0 %v256
    %332 = vmatpush1.msra.mxu0 %v255
    %333 = vmatprep.subr.mxu0 %v258
    %334 = vmatpush1.msra.mxu0 %v257
    %335 = vmatprep.subr.mxu0 %v260
    %336 = vmatpush1.msra.mxu0 %v259
    %337 = vmatprep.subr.mxu0 %v262
    %338 = vmatpush1.msra.mxu0 %v261
    %339 = vmatprep.subr.mxu0 %v264
    %340 = vmatpush1.msra.mxu0 %v263
    %341 = vmatprep.subr.mxu0 %v266
    %342 = vmatpush1.msra.mxu0 %v265
    %343 = vmatprep.subr.mxu0 %v268
    %344 = vmatpush1.msra.mxu0 %v267
    %345 = vmatprep.subr.mxu0 %v270
    %346 = vmatpush1.msra.mxu0 %v269
    %347 = vmatprep.mubr.f32.mxu0 %v206
    %348 = vmatmul.mubr.f32.gmra.mrb[0].mxu0 %v204
    %v349 = vpop.f32.mrb[0].mxu0
    %v350 = vadd.f32 %v276, %v349
    %v351 = vpop.f32.mrb[0].mxu0
    %v352 = vadd.f32 %v280, %v351
    %353 = vdwg.mxu0
    %v354 = vxor.u32 %v350, 2147483648
    %v355 = vxor.u32 %v352, 2147483648
    %v356 = vmul.f32 %v354, 1.442695
    %v357 = vpow.pop %v356
    %v358 = vmul.f32 %v355, 1.442695
    %v359 = vpow.pop %v358
    %v360 = vadd.f32 %v357, 1.0
    %v361 = vadd.f32 %v359, 1.0
    %v362 = vrcp.pop %v360
    %v363 = vmul.f32 1.0, %v362
    %v364 = vrcp.pop %v361
    %v365 = vmul.f32 1.0, %v364
    %v366 = vld [vmem:[#allocation9] sm:$0xff]
    %v367 = vld [vmem:[#allocation9 + $0x8] sm:$0xff]
    %v368 = vld [vmem:[#allocation9 + $0x10] sm:$0xff]
    %v369 = vld [vmem:[#allocation9 + $0x18] sm:$0xff]
    %v370 = vld [vmem:[#allocation9 + $0x20] sm:$0xff]
    %v371 = vld [vmem:[#allocation9 + $0x28] sm:$0xff]
    %v372 = vld [vmem:[#allocation9 + $0x30] sm:$0xff]
    %v373 = vld [vmem:[#allocation9 + $0x38] sm:$0xff]
    %v374 = vld [vmem:[#allocation9 + $0x40] sm:$0xff]
    %v375 = vld [vmem:[#allocation9 + $0x48] sm:$0xff]
    %v376 = vld [vmem:[#allocation9 + $0x50] sm:$0xff]
    %v377 = vld [vmem:[#allocation9 + $0x58] sm:$0xff]
    %v378 = vld [vmem:[#allocation9 + $0x60] sm:$0xff]
    %v379 = vld [vmem:[#allocation9 + $0x68] sm:$0xff]
    %v380 = vld [vmem:[#allocation9 + $0x70] sm:$0xff]
    %v381 = vld [vmem:[#allocation9 + $0x78] sm:$0xff]
    %v382 = vld [vmem:[#allocation9 + $0x80] sm:$0xff]
    %v383 = vld [vmem:[#allocation9 + $0x88] sm:$0xff]
    %v384 = vld [vmem:[#allocation9 + $0x90] sm:$0xff]
    %v385 = vld [vmem:[#allocation9 + $0x98] sm:$0xff]
    %v386 = vld [vmem:[#allocation9 + $0xa0] sm:$0xff]
    %v387 = vld [vmem:[#allocation9 + $0xa8] sm:$0xff]
    %v388 = vld [vmem:[#allocation9 + $0xb0] sm:$0xff]
    %v389 = vld [vmem:[#allocation9 + $0xb8] sm:$0xff]
    %v390 = vld [vmem:[#allocation9 + $0xc0] sm:$0xff]
    %v391 = vld [vmem:[#allocation9 + $0xc8] sm:$0xff]
    %v392 = vld [vmem:[#allocation9 + $0xd0] sm:$0xff]
    %v393 = vld [vmem:[#allocation9 + $0xd8] sm:$0xff]
    %v394 = vld [vmem:[#allocation9 + $0xe0] sm:$0xff]
    %v395 = vld [vmem:[#allocation9 + $0xe8] sm:$0xff]
    %v396 = vld [vmem:[#allocation9 + $0xf0] sm:$0xff]
    %v397 = vld [vmem:[#allocation9 + $0xf8] sm:$0xff]
    %398 = vmatprep.subr.mxu0 0.0
    %399 = vmatpush1.msra.mxu0 %v366
    %400 = vmatprep.subr.mxu0 0.0
    %401 = vmatpush1.msra.mxu0 %v367
    %402 = vmatprep.subr.mxu0 0.0
    %403 = vmatpush1.msra.mxu0 %v368
    %404 = vmatprep.subr.mxu0 0.0
    %405 = vmatpush1.msra.mxu0 %v369
    %406 = vmatprep.subr.mxu0 0.0
    %407 = vmatpush1.msra.mxu0 %v370
    %408 = vmatprep.subr.mxu0 0.0
    %409 = vmatpush1.msra.mxu0 %v371
    %410 = vmatprep.subr.mxu0 0.0
    %411 = vmatpush1.msra.mxu0 %v372
    %412 = vmatprep.subr.mxu0 0.0
    %413 = vmatpush1.msra.mxu0 %v373
    %414 = vmatprep.subr.mxu0 0.0
    %415 = vmatpush1.msra.mxu0 %v374
    %416 = vmatprep.subr.mxu0 0.0
    %417 = vmatpush1.msra.mxu0 %v375
    %418 = vmatprep.subr.mxu0 0.0
    %419 = vmatpush1.msra.mxu0 %v376
    %420 = vmatprep.subr.mxu0 0.0
    %421 = vmatpush1.msra.mxu0 %v377
    %422 = vmatprep.subr.mxu0 0.0
    %423 = vmatpush1.msra.mxu0 %v378
    %424 = vmatprep.subr.mxu0 0.0
    %425 = vmatpush1.msra.mxu0 %v379
    %426 = vmatprep.subr.mxu0 0.0
    %427 = vmatpush1.msra.mxu0 %v380
    %428 = vmatprep.subr.mxu0 0.0
    %429 = vmatpush1.msra.mxu0 %v381
    %430 = vmatprep.subr.mxu0 0.0
    %431 = vmatpush1.msra.mxu0 %v382
    %432 = vmatprep.subr.mxu0 0.0
    %433 = vmatpush1.msra.mxu0 %v383
    %434 = vmatprep.subr.mxu0 0.0
    %435 = vmatpush1.msra.mxu0 %v384
    %436 = vmatprep.subr.mxu0 0.0
    %437 = vmatpush1.msra.mxu0 %v385
    %438 = vmatprep.subr.mxu0 0.0
    %439 = vmatpush1.msra.mxu0 %v386
    %440 = vmatprep.subr.mxu0 0.0
    %441 = vmatpush1.msra.mxu0 %v387
    %442 = vmatprep.subr.mxu0 0.0
    %443 = vmatpush1.msra.mxu0 %v388
    %444 = vmatprep.subr.mxu0 0.0
    %445 = vmatpush1.msra.mxu0 %v389
    %446 = vmatprep.subr.mxu0 0.0
    %447 = vmatpush1.msra.mxu0 %v390
    %448 = vmatprep.subr.mxu0 0.0
    %449 = vmatpush1.msra.mxu0 %v391
    %450 = vmatprep.subr.mxu0 0.0
    %451 = vmatpush1.msra.mxu0 %v392
    %452 = vmatprep.subr.mxu0 0.0
    %453 = vmatpush1.msra.mxu0 %v393
    %454 = vmatprep.subr.mxu0 0.0
    %455 = vmatpush1.msra.mxu0 %v394
    %456 = vmatprep.subr.mxu0 0.0
    %457 = vmatpush1.msra.mxu0 %v395
    %458 = vmatprep.subr.mxu0 0.0
    %459 = vmatpush1.msra.mxu0 %v396
    %460 = vmatprep.subr.mxu0 0.0
    %461 = vmatpush1.msra.mxu0 %v397
    %462 = vmatprep.mubr.f32.mxu0 %v365
    %463 = vmatmul.mubr.f32.gmra.mrb[0].mxu0 %v363
    %v464 = vpop.f32.mrb[0].mxu0
    %v465 = vadd.f32 0.0, %v464
    %v466 = vpop.f32.mrb[0].mxu0
    %467 = vdwg.mxu0
    %v468 = vadd.f32 %v79, %v465
    %s469 = sld [smem:[#allocation2]]
    %v470 = vstv %s469
    %v471 = vmul.f32 %v470, %v468
    %s472 = scalar_lea.vmem [#allocation6], 256
    %v473 = vld [vmem:[%s472] sm:$0xff]
    %v474 = vld [vmem:[%s472 + $0x8] sm:$0xff]
    %v475 = vld [vmem:[%s472 + $0x10] sm:$0xff]
    %v476 = vld [vmem:[%s472 + $0x18] sm:$0xff]
    %v477 = vld [vmem:[%s472 + $0x20] sm:$0xff]
    %v478 = vld [vmem:[%s472 + $0x28] sm:$0xff]
    %v479 = vld [vmem:[%s472 + $0x30] sm:$0xff]
    %v480 = vld [vmem:[%s472 + $0x38] sm:$0xff]
    %v481 = vld [vmem:[%s472 + $0x40] sm:$0xff]
    %v482 = vld [vmem:[%s472 + $0x48] sm:$0xff]
    %v483 = vld [vmem:[%s472 + $0x50] sm:$0xff]
    %v484 = vld [vmem:[%s472 + $0x58] sm:$0xff]
    %v485 = vld [vmem:[%s472 + $0x60] sm:$0xff]
    %v486 = vld [vmem:[%s472 + $0x68] sm:$0xff]
    %v487 = vld [vmem:[%s472 + $0x70] sm:$0xff]
    %v488 = vld [vmem:[%s472 + $0x78] sm:$0xff]
    %v489 = vld [vmem:[%s472 + $0x80] sm:$0xff]
    %v490 = vld [vmem:[%s472 + $0x88] sm:$0xff]
    %v491 = vld [vmem:[%s472 + $0x90] sm:$0xff]
    %v492 = vld [vmem:[%s472 + $0x98] sm:$0xff]
    %v493 = vld [vmem:[%s472 + $0xa0] sm:$0xff]
    %v494 = vld [vmem:[%s472 + $0xa8] sm:$0xff]
    %v495 = vld [vmem:[%s472 + $0xb0] sm:$0xff]
    %v496 = vld [vmem:[%s472 + $0xb8] sm:$0xff]
    %v497 = vld [vmem:[%s472 + $0xc0] sm:$0xff]
    %v498 = vld [vmem:[%s472 + $0xc8] sm:$0xff]
    %v499 = vld [vmem:[%s472 + $0xd0] sm:$0xff]
    %v500 = vld [vmem:[%s472 + $0xd8] sm:$0xff]
    %v501 = vld [vmem:[%s472 + $0xe0] sm:$0xff]
    %v502 = vld [vmem:[%s472 + $0xe8] sm:$0xff]
    %v503 = vld [vmem:[%s472 + $0xf0] sm:$0xff]
    %v504 = vld [vmem:[%s472 + $0xf8] sm:$0xff]
    %s505 = scalar_lea.vmem %s3, 2
    %v506 = vld [vmem:[%s505] sm:$0x3]
    %v508 = vlaneseq
    %v509 = vshrl.u32 %v508, 7
    %v510 = vsub.s32 0, %v509
    %v511 = vrot.slane %v506, %v510
    %v512 = vlaneseq
    %v513 = vshrl.u32 %v512, 7
    %v514 = vsub.s32 1, %v513
    %v515 = vrot.slane %v506, %v514
    %518 = vmatprep.subr.mxu0 %v474
    %519 = vmatpush1.msra.mxu0 %v473
    %520 = vmatprep.subr.mxu0 %v476
    %521 = vmatpush1.msra.mxu0 %v475
    %522 = vmatprep.subr.mxu0 %v478
    %523 = vmatpush1.msra.mxu0 %v477
    %524 = vmatprep.subr.mxu0 %v480
    %525 = vmatpush1.msra.mxu0 %v479
    %526 = vmatprep.subr.mxu0 %v482
    %527 = vmatpush1.msra.mxu0 %v481
    %528 = vmatprep.subr.mxu0 %v484
    %529 = vmatpush1.msra.mxu0 %v483
    %530 = vmatprep.subr.mxu0 %v486
    %531 = vmatpush1.msra.mxu0 %v485
    %532 = vmatprep.subr.mxu0 %v488
    %533 = vmatpush1.msra.mxu0 %v487
    %534 = vmatprep.subr.mxu0 %v490
    %535 = vmatpush1.msra.mxu0 %v489
    %536 = vmatprep.subr.mxu0 %v492
    %537 = vmatpush1.msra.mxu0 %v491
    %538 = vmatprep.subr.mxu0 %v494
    %539 = vmatpush1.msra.mxu0 %v493
    %540 = vmatprep.subr.mxu0 %v496
    %541 = vmatpush1.msra.mxu0 %v495
    %542 = vmatprep.subr.mxu0 %v498
    %543 = vmatpush1.msra.mxu0 %v497
    %544 = vmatprep.subr.mxu0 %v500
    %545 = vmatpush1.msra.mxu0 %v499
    %546 = vmatprep.subr.mxu0 %v502
    %547 = vmatpush1.msra.mxu0 %v501
    %548 = vmatprep.subr.mxu0 %v504
    %549 = vmatpush1.msra.mxu0 %v503
    %550 = vmatprep.subr.mxu0 0.0
    %551 = vmatpush1.msra.mxu0 0.0
    %552 = vmatprep.subr.mxu0 0.0
    %553 = vmatpush1.msra.mxu0 0.0
    %554 = vmatprep.subr.mxu0 0.0
    %555 = vmatpush1.msra.mxu0 0.0
    %556 = vmatprep.subr.mxu0 0.0
    %557 = vmatpush1.msra.mxu0 0.0
    %558 = vmatprep.subr.mxu0 0.0
    %559 = vmatpush1.msra.mxu0 0.0
    %560 = vmatprep.subr.mxu0 0.0
    %561 = vmatpush1.msra.mxu0 0.0
    %562 = vmatprep.subr.mxu0 0.0
    %563 = vmatpush1.msra.mxu0 0.0
    %564 = vmatprep.subr.mxu0 0.0
    %565 = vmatpush1.msra.mxu0 0.0
    %566 = vmatprep.subr.mxu0 0.0
    %567 = vmatpush1.msra.mxu0 0.0
    %568 = vmatprep.subr.mxu0 0.0
    %569 = vmatpush1.msra.mxu0 0.0
    %570 = vmatprep.subr.mxu0 0.0
    %571 = vmatpush1.msra.mxu0 0.0
    %572 = vmatprep.subr.mxu0 0.0
    %573 = vmatpush1.msra.mxu0 0.0
    %574 = vmatprep.subr.mxu0 0.0
    %575 = vmatpush1.msra.mxu0 0.0
    %576 = vmatprep.subr.mxu0 0.0
    %577 = vmatpush1.msra.mxu0 0.0
    %578 = vmatprep.subr.mxu0 0.0
    %579 = vmatpush1.msra.mxu0 0.0
    %580 = vmatprep.subr.mxu0 0.0
    %581 = vmatpush1.msra.mxu0 0.0
    %582 = vmatprep.mubr.f32.mxu0 0.0
    %583 = vmatmul.mubr.f32.gmra.mrb[0].mxu0 %v468
    %v584 = vpop.f32.mrb[0].mxu0
    %v585 = vadd.f32 %v511, %v584
    %v586 = vpop.f32.mrb[0].mxu0
    %v587 = vadd.f32 %v515, %v586
    %588 = vdwg.mxu0
    %v589 = vxor.u32 %v585, 2147483648
    %v590 = vxor.u32 %v587, 2147483648
    %v591 = vmul.f32 %v589, 1.442695
    %v592 = vpow.pop %v591
    %v593 = vmul.f32 %v590, 1.442695
    %v594 = vpow.pop %v593
    %v595 = vadd.f32 %v592, 1.0
    %v596 = vadd.f32 %v594, 1.0
    %v597 = vrcp.pop %v595
    %v598 = vmul.f32 1.0, %v597
    %v599 = vrcp.pop %v596
    %v600 = vmul.f32 1.0, %v599
    %s601 = scalar_lea.vmem [#allocation7], 512
    %v602 = vld [vmem:[%s601] sm:$0xff]
    %v603 = vld [vmem:[%s601 + $0x8] sm:$0xff]
    %v604 = vld [vmem:[%s601 + $0x10] sm:$0xff]
    %v605 = vld [vmem:[%s601 + $0x18] sm:$0xff]
    %v606 = vld [vmem:[%s601 + $0x20] sm:$0xff]
    %v607 = vld [vmem:[%s601 + $0x28] sm:$0xff]
    %v608 = vld [vmem:[%s601 + $0x30] sm:$0xff]
    %v609 = vld [vmem:[%s601 + $0x38] sm:$0xff]
    %v610 = vld [vmem:[%s601 + $0x40] sm:$0xff]
    %v611 = vld [vmem:[%s601 + $0x48] sm:$0xff]
    %v612 = vld [vmem:[%s601 + $0x50] sm:$0xff]
    %v613 = vld [vmem:[%s601 + $0x58] sm:$0xff]
    %v614 = vld [vmem:[%s601 + $0x60] sm:$0xff]
    %v615 = vld [vmem:[%s601 + $0x68] sm:$0xff]
    %v616 = vld [vmem:[%s601 + $0x70] sm:$0xff]
    %v617 = vld [vmem:[%s601 + $0x78] sm:$0xff]
    %v618 = vld [vmem:[%s601 + $0x80] sm:$0xff]
    %v619 = vld [vmem:[%s601 + $0x88] sm:$0xff]
    %v620 = vld [vmem:[%s601 + $0x90] sm:$0xff]
    %v621 = vld [vmem:[%s601 + $0x98] sm:$0xff]
    %v622 = vld [vmem:[%s601 + $0xa0] sm:$0xff]
    %v623 = vld [vmem:[%s601 + $0xa8] sm:$0xff]
    %v624 = vld [vmem:[%s601 + $0xb0] sm:$0xff]
    %v625 = vld [vmem:[%s601 + $0xb8] sm:$0xff]
    %v626 = vld [vmem:[%s601 + $0xc0] sm:$0xff]
    %v627 = vld [vmem:[%s601 + $0xc8] sm:$0xff]
    %v628 = vld [vmem:[%s601 + $0xd0] sm:$0xff]
    %v629 = vld [vmem:[%s601 + $0xd8] sm:$0xff]
    %v630 = vld [vmem:[%s601 + $0xe0] sm:$0xff]
    %v631 = vld [vmem:[%s601 + $0xe8] sm:$0xff]
    %v632 = vld [vmem:[%s601 + $0xf0] sm:$0xff]
    %v633 = vld [vmem:[%s601 + $0xf8] sm:$0xff]
    %v634 = vld [vmem:[%s601 + $0x100] sm:$0xff]
    %v635 = vld [vmem:[%s601 + $0x108] sm:$0xff]
    %v636 = vld [vmem:[%s601 + $0x110] sm:$0xff]
    %v637 = vld [vmem:[%s601 + $0x118] sm:$0xff]
    %v638 = vld [vmem:[%s601 + $0x120] sm:$0xff]
    %v639 = vld [vmem:[%s601 + $0x128] sm:$0xff]
    %v640 = vld [vmem:[%s601 + $0x130] sm:$0xff]
    %v641 = vld [vmem:[%s601 + $0x138] sm:$0xff]
    %v642 = vld [vmem:[%s601 + $0x140] sm:$0xff]
    %v643 = vld [vmem:[%s601 + $0x148] sm:$0xff]
    %v644 = vld [vmem:[%s601 + $0x150] sm:$0xff]
    %v645 = vld [vmem:[%s601 + $0x158] sm:$0xff]
    %v646 = vld [vmem:[%s601 + $0x160] sm:$0xff]
    %v647 = vld [vmem:[%s601 + $0x168] sm:$0xff]
    %v648 = vld [vmem:[%s601 + $0x170] sm:$0xff]
    %v649 = vld [vmem:[%s601 + $0x178] sm:$0xff]
    %v650 = vld [vmem:[%s601 + $0x180] sm:$0xff]
    %v651 = vld [vmem:[%s601 + $0x188] sm:$0xff]
    %v652 = vld [vmem:[%s601 + $0x190] sm:$0xff]
    %v653 = vld [vmem:[%s601 + $0x198] sm:$0xff]
    %v654 = vld [vmem:[%s601 + $0x1a0] sm:$0xff]
    %v655 = vld [vmem:[%s601 + $0x1a8] sm:$0xff]
    %v656 = vld [vmem:[%s601 + $0x1b0] sm:$0xff]
    %v657 = vld [vmem:[%s601 + $0x1b8] sm:$0xff]
    %v658 = vld [vmem:[%s601 + $0x1c0] sm:$0xff]
    %v659 = vld [vmem:[%s601 + $0x1c8] sm:$0xff]
    %v660 = vld [vmem:[%s601 + $0x1d0] sm:$0xff]
    %v661 = vld [vmem:[%s601 + $0x1d8] sm:$0xff]
    %v662 = vld [vmem:[%s601 + $0x1e0] sm:$0xff]
    %v663 = vld [vmem:[%s601 + $0x1e8] sm:$0xff]
    %v664 = vld [vmem:[%s601 + $0x1f0] sm:$0xff]
    %v665 = vld [vmem:[%s601 + $0x1f8] sm:$0xff]
    %s666 = scalar_lea.vmem %s5, 2
    %v667 = vld [vmem:[%s666] sm:$0x3]
    %v669 = vlaneseq
    %v670 = vshrl.u32 %v669, 7
    %v671 = vsub.s32 0, %v670
    %v672 = vrot.slane %v667, %v671
    %v673 = vlaneseq
    %v674 = vshrl.u32 %v673, 7
    %v675 = vsub.s32 1, %v674
    %v676 = vrot.slane %v667, %v675
    %679 = vmatprep.subr.mxu0 %v603
    %680 = vmatpush1.msra.mxu0 %v602
    %681 = vmatprep.subr.mxu0 %v605
    %682 = vmatpush1.msra.mxu0 %v604
    %683 = vmatprep.subr.mxu0 %v607
    %684 = vmatpush1.msra.mxu0 %v606
    %685 = vmatprep.subr.mxu0 %v609
    %686 = vmatpush1.msra.mxu0 %v608
    %687 = vmatprep.subr.mxu0 %v611
    %688 = vmatpush1.msra.mxu0 %v610
    %689 = vmatprep.subr.mxu0 %v613
    %690 = vmatpush1.msra.mxu0 %v612
    %691 = vmatprep.subr.mxu0 %v615
    %692 = vmatpush1.msra.mxu0 %v614
    %693 = vmatprep.subr.mxu0 %v617
    %694 = vmatpush1.msra.mxu0 %v616
    %695 = vmatprep.subr.mxu0 %v619
    %696 = vmatpush1.msra.mxu0 %v618
    %697 = vmatprep.subr.mxu0 %v621
    %698 = vmatpush1.msra.mxu0 %v620
    %699 = vmatprep.subr.mxu0 %v623
    %700 = vmatpush1.msra.mxu0 %v622
    %701 = vmatprep.subr.mxu0 %v625
    %702 = vmatpush1.msra.mxu0 %v624
    %703 = vmatprep.subr.mxu0 %v627
    %704 = vmatpush1.msra.mxu0 %v626
    %705 = vmatprep.subr.mxu0 %v629
    %706 = vmatpush1.msra.mxu0 %v628
    %707 = vmatprep.subr.mxu0 %v631
    %708 = vmatpush1.msra.mxu0 %v630
    %709 = vmatprep.subr.mxu0 %v633
    %710 = vmatpush1.msra.mxu0 %v632
    %711 = vmatprep.subr.mxu0 %v635
    %712 = vmatpush1.msra.mxu0 %v634
    %713 = vmatprep.subr.mxu0 %v637
    %714 = vmatpush1.msra.mxu0 %v636
    %715 = vmatprep.subr.mxu0 %v639
    %716 = vmatpush1.msra.mxu0 %v638
    %717 = vmatprep.subr.mxu0 %v641
    %718 = vmatpush1.msra.mxu0 %v640
    %719 = vmatprep.subr.mxu0 %v643
    %720 = vmatpush1.msra.mxu0 %v642
    %721 = vmatprep.subr.mxu0 %v645
    %722 = vmatpush1.msra.mxu0 %v644
    %723 = vmatprep.subr.mxu0 %v647
    %724 = vmatpush1.msra.mxu0 %v646
    %725 = vmatprep.subr.mxu0 %v649
    %726 = vmatpush1.msra.mxu0 %v648
    %727 = vmatprep.subr.mxu0 %v651
    %728 = vmatpush1.msra.mxu0 %v650
    %729 = vmatprep.subr.mxu0 %v653
    %730 = vmatpush1.msra.mxu0 %v652
    %731 = vmatprep.subr.mxu0 %v655
    %732 = vmatpush1.msra.mxu0 %v654
    %733 = vmatprep.subr.mxu0 %v657
    %734 = vmatpush1.msra.mxu0 %v656
    %735 = vmatprep.subr.mxu0 %v659
    %736 = vmatpush1.msra.mxu0 %v658
    %737 = vmatprep.subr.mxu0 %v661
    %738 = vmatpush1.msra.mxu0 %v660
    %739 = vmatprep.subr.mxu0 %v663
    %740 = vmatpush1.msra.mxu0 %v662
    %741 = vmatprep.subr.mxu0 %v665
    %742 = vmatpush1.msra.mxu0 %v664
    %743 = vmatprep.mubr.f32.mxu0 %v600
    %744 = vmatmul.mubr.f32.gmra.mrb[0].mxu0 %v598
    %v745 = vpop.f32.mrb[0].mxu0
    %v746 = vadd.f32 %v672, %v745
    %v747 = vpop.f32.mrb[0].mxu0
    %v748 = vadd.f32 %v676, %v747
    %749 = vdwg.mxu0
    %v750 = vxor.u32 %v746, 2147483648
    %v751 = vxor.u32 %v748, 2147483648
    %v752 = vmul.f32 %v750, 1.442695
    %v753 = vpow.pop %v752
    %v754 = vmul.f32 %v751, 1.442695
    %v755 = vpow.pop %v754
    %v756 = vadd.f32 %v753, 1.0
    %v757 = vadd.f32 %v755, 1.0
    %v758 = vrcp.pop %v756
    %v759 = vmul.f32 1.0, %v758
    %v760 = vrcp.pop %v757
    %v761 = vmul.f32 1.0, %v760
    %s762 = scalar_lea.vmem [#allocation9], 256
    %v763 = vld [vmem:[%s762] sm:$0xff]
    %v764 = vld [vmem:[%s762 + $0x8] sm:$0xff]
    %v765 = vld [vmem:[%s762 + $0x10] sm:$0xff]
    %v766 = vld [vmem:[%s762 + $0x18] sm:$0xff]
    %v767 = vld [vmem:[%s762 + $0x20] sm:$0xff]
    %v768 = vld [vmem:[%s762 + $0x28] sm:$0xff]
    %v769 = vld [vmem:[%s762 + $0x30] sm:$0xff]
    %v770 = vld [vmem:[%s762 + $0x38] sm:$0xff]
    %v771 = vld [vmem:[%s762 + $0x40] sm:$0xff]
    %v772 = vld [vmem:[%s762 + $0x48] sm:$0xff]
    %v773 = vld [vmem:[%s762 + $0x50] sm:$0xff]
    %v774 = vld [vmem:[%s762 + $0x58] sm:$0xff]
    %v775 = vld [vmem:[%s762 + $0x60] sm:$0xff]
    %v776 = vld [vmem:[%s762 + $0x68] sm:$0xff]
    %v777 = vld [vmem:[%s762 + $0x70] sm:$0xff]
    %v778 = vld [vmem:[%s762 + $0x78] sm:$0xff]
    %v779 = vld [vmem:[%s762 + $0x80] sm:$0xff]
    %v780 = vld [vmem:[%s762 + $0x88] sm:$0xff]
    %v781 = vld [vmem:[%s762 + $0x90] sm:$0xff]
    %v782 = vld [vmem:[%s762 + $0x98] sm:$0xff]
    %v783 = vld [vmem:[%s762 + $0xa0] sm:$0xff]
    %v784 = vld [vmem:[%s762 + $0xa8] sm:$0xff]
    %v785 = vld [vmem:[%s762 + $0xb0] sm:$0xff]
    %v786 = vld [vmem:[%s762 + $0xb8] sm:$0xff]
    %v787 = vld [vmem:[%s762 + $0xc0] sm:$0xff]
    %v788 = vld [vmem:[%s762 + $0xc8] sm:$0xff]
    %v789 = vld [vmem:[%s762 + $0xd0] sm:$0xff]
    %v790 = vld [vmem:[%s762 + $0xd8] sm:$0xff]
    %v791 = vld [vmem:[%s762 + $0xe0] sm:$0xff]
    %v792 = vld [vmem:[%s762 + $0xe8] sm:$0xff]
    %v793 = vld [vmem:[%s762 + $0xf0] sm:$0xff]
    %v794 = vld [vmem:[%s762 + $0xf8] sm:$0xff]
    %795 = vmatprep.subr.mxu0 0.0
    %796 = vmatpush1.msra.mxu0 %v763
    %797 = vmatprep.subr.mxu0 0.0
    %798 = vmatpush1.msra.mxu0 %v764
    %799 = vmatprep.subr.mxu0 0.0
    %800 = vmatpush1.msra.mxu0 %v765
    %801 = vmatprep.subr.mxu0 0.0
    %802 = vmatpush1.msra.mxu0 %v766
    %803 = vmatprep.subr.mxu0 0.0
    %804 = vmatpush1.msra.mxu0 %v767
    %805 = vmatprep.subr.mxu0 0.0
    %806 = vmatpush1.msra.mxu0 %v768
    %807 = vmatprep.subr.mxu0 0.0
    %808 = vmatpush1.msra.mxu0 %v769
    %809 = vmatprep.subr.mxu0 0.0
    %810 = vmatpush1.msra.mxu0 %v770
    %811 = vmatprep.subr.mxu0 0.0
    %812 = vmatpush1.msra.mxu0 %v771
    %813 = vmatprep.subr.mxu0 0.0
    %814 = vmatpush1.msra.mxu0 %v772
    %815 = vmatprep.subr.mxu0 0.0
    %816 = vmatpush1.msra.mxu0 %v773
    %817 = vmatprep.subr.mxu0 0.0
    %818 = vmatpush1.msra.mxu0 %v774
    %819 = vmatprep.subr.mxu0 0.0
    %820 = vmatpush1.msra.mxu0 %v775
    %821 = vmatprep.subr.mxu0 0.0
    %822 = vmatpush1.msra.mxu0 %v776
    %823 = vmatprep.subr.mxu0 0.0
    %824 = vmatpush1.msra.mxu0 %v777
    %825 = vmatprep.subr.mxu0 0.0
    %826 = vmatpush1.msra.mxu0 %v778
    %827 = vmatprep.subr.mxu0 0.0
    %828 = vmatpush1.msra.mxu0 %v779
    %829 = vmatprep.subr.mxu0 0.0
    %830 = vmatpush1.msra.mxu0 %v780
    %831 = vmatprep.subr.mxu0 0.0
    %832 = vmatpush1.msra.mxu0 %v781
    %833 = vmatprep.subr.mxu0 0.0
    %834 = vmatpush1.msra.mxu0 %v782
    %835 = vmatprep.subr.mxu0 0.0
    %836 = vmatpush1.msra.mxu0 %v783
    %837 = vmatprep.subr.mxu0 0.0
    %838 = vmatpush1.msra.mxu0 %v784
    %839 = vmatprep.subr.mxu0 0.0
    %840 = vmatpush1.msra.mxu0 %v785
    %841 = vmatprep.subr.mxu0 0.0
    %842 = vmatpush1.msra.mxu0 %v786
    %843 = vmatprep.subr.mxu0 0.0
    %844 = vmatpush1.msra.mxu0 %v787
    %845 = vmatprep.subr.mxu0 0.0
    %846 = vmatpush1.msra.mxu0 %v788
    %847 = vmatprep.subr.mxu0 0.0
    %848 = vmatpush1.msra.mxu0 %v789
    %849 = vmatprep.subr.mxu0 0.0
    %850 = vmatpush1.msra.mxu0 %v790
    %851 = vmatprep.subr.mxu0 0.0
    %852 = vmatpush1.msra.mxu0 %v791
    %853 = vmatprep.subr.mxu0 0.0
    %854 = vmatpush1.msra.mxu0 %v792
    %855 = vmatprep.subr.mxu0 0.0
    %856 = vmatpush1.msra.mxu0 %v793
    %857 = vmatprep.subr.mxu0 0.0
    %858 = vmatpush1.msra.mxu0 %v794
    %859 = vmatprep.mubr.f32.mxu0 %v761
    %860 = vmatmul.mubr.f32.gmra.mrb[0].mxu0 %v759
    %v861 = vpop.f32.mrb[0].mxu0
    %v862 = vadd.f32 0.0, %v861
    %v863 = vpop.f32.mrb[0].mxu0
    %864 = vdwg.mxu0
    %v865 = vadd.f32 %v468, %v862
    %s866 = sld [smem:[#allocation2 + $0x1]]
    %v867 = vstv %s866
    %v868 = vmul.f32 %v867, %v865
    %v869 = vadd.f32 %v471, %v868
    %s870 = scalar_lea.vmem [#allocation6], 512
    %v871 = vld [vmem:[%s870] sm:$0xff]
    %v872 = vld [vmem:[%s870 + $0x8] sm:$0xff]
    %v873 = vld [vmem:[%s870 + $0x10] sm:$0xff]
    %v874 = vld [vmem:[%s870 + $0x18] sm:$0xff]
    %v875 = vld [vmem:[%s870 + $0x20] sm:$0xff]
    %v876 = vld [vmem:[%s870 + $0x28] sm:$0xff]
    %v877 = vld [vmem:[%s870 + $0x30] sm:$0xff]
    %v878 = vld [vmem:[%s870 + $0x38] sm:$0xff]
    %v879 = vld [vmem:[%s870 + $0x40] sm:$0xff]
    %v880 = vld [vmem:[%s870 + $0x48] sm:$0xff]
    %v881 = vld [vmem:[%s870 + $0x50] sm:$0xff]
    %v882 = vld [vmem:[%s870 + $0x58] sm:$0xff]
    %v883 = vld [vmem:[%s870 + $0x60] sm:$0xff]
    %v884 = vld [vmem:[%s870 + $0x68] sm:$0xff]
    %v885 = vld [vmem:[%s870 + $0x70] sm:$0xff]
    %v886 = vld [vmem:[%s870 + $0x78] sm:$0xff]
    %v887 = vld [vmem:[%s870 + $0x80] sm:$0xff]
    %v888 = vld [vmem:[%s870 + $0x88] sm:$0xff]
    %v889 = vld [vmem:[%s870 + $0x90] sm:$0xff]
    %v890 = vld [vmem:[%s870 + $0x98] sm:$0xff]
    %v891 = vld [vmem:[%s870 + $0xa0] sm:$0xff]
    %v892 = vld [vmem:[%s870 + $0xa8] sm:$0xff]
    %v893 = vld [vmem:[%s870 + $0xb0] sm:$0xff]
    %v894 = vld [vmem:[%s870 + $0xb8] sm:$0xff]
    %v895 = vld [vmem:[%s870 + $0xc0] sm:$0xff]
    %v896 = vld [vmem:[%s870 + $0xc8] sm:$0xff]
    %v897 = vld [vmem:[%s870 + $0xd0] sm:$0xff]
    %v898 = vld [vmem:[%s870 + $0xd8] sm:$0xff]
    %v899 = vld [vmem:[%s870 + $0xe0] sm:$0xff]
    %v900 = vld [vmem:[%s870 + $0xe8] sm:$0xff]
    %v901 = vld [vmem:[%s870 + $0xf0] sm:$0xff]
    %v902 = vld [vmem:[%s870 + $0xf8] sm:$0xff]
    %s903 = scalar_lea.vmem %s3, 4
    %v904 = vld [vmem:[%s903] sm:$0x3]
    %v906 = vlaneseq
    %v907 = vshrl.u32 %v906, 7
    %v908 = vsub.s32 0, %v907
    %v909 = vrot.slane %v904, %v908
    %v910 = vlaneseq
    %v911 = vshrl.u32 %v910, 7
    %v912 = vsub.s32 1, %v911
    %v913 = vrot.slane %v904, %v912
    %916 = vmatprep.subr.mxu0 %v872
    %917 = vmatpush1.msra.mxu0 %v871
    %918 = vmatprep.subr.mxu0 %v874
    %919 = vmatpush1.msra.mxu0 %v873
    %920 = vmatprep.subr.mxu0 %v876
    %921 = vmatpush1.msra.mxu0 %v875
    %922 = vmatprep.subr.mxu0 %v878
    %923 = vmatpush1.msra.mxu0 %v877
    %924 = vmatprep.subr.mxu0 %v880
    %925 = vmatpush1.msra.mxu0 %v879
    %926 = vmatprep.subr.mxu0 %v882
    %927 = vmatpush1.msra.mxu0 %v881
    %928 = vmatprep.subr.mxu0 %v884
    %929 = vmatpush1.msra.mxu0 %v883
    %930 = vmatprep.subr.mxu0 %v886
    %931 = vmatpush1.msra.mxu0 %v885
    %932 = vmatprep.subr.mxu0 %v888
    %933 = vmatpush1.msra.mxu0 %v887
    %934 = vmatprep.subr.mxu0 %v890
    %935 = vmatpush1.msra.mxu0 %v889
    %936 = vmatprep.subr.mxu0 %v892
    %937 = vmatpush1.msra.mxu0 %v891
    %938 = vmatprep.subr.mxu0 %v894
    %939 = vmatpush1.msra.mxu0 %v893
    %940 = vmatprep.subr.mxu0 %v896
    %941 = vmatpush1.msra.mxu0 %v895
    %942 = vmatprep.subr.mxu0 %v898
    %943 = vmatpush1.msra.mxu0 %v897
    %944 = vmatprep.subr.mxu0 %v900
    %945 = vmatpush1.msra.mxu0 %v899
    %946 = vmatprep.subr.mxu0 %v902
    %947 = vmatpush1.msra.mxu0 %v901
    %948 = vmatprep.subr.mxu0 0.0
    %949 = vmatpush1.msra.mxu0 0.0
    %950 = vmatprep.subr.mxu0 0.0
    %951 = vmatpush1.msra.mxu0 0.0
    %952 = vmatprep.subr.mxu0 0.0
    %953 = vmatpush1.msra.mxu0 0.0
    %954 = vmatprep.subr.mxu0 0.0
    %955 = vmatpush1.msra.mxu0 0.0
    %956 = vmatprep.subr.mxu0 0.0
    %957 = vmatpush1.msra.mxu0 0.0
    %958 = vmatprep.subr.mxu0 0.0
    %959 = vmatpush1.msra.mxu0 0.0
    %960 = vmatprep.subr.mxu0 0.0
    %961 = vmatpush1.msra.mxu0 0.0
    %962 = vmatprep.subr.mxu0 0.0
    %963 = vmatpush1.msra.mxu0 0.0
    %964 = vmatprep.subr.mxu0 0.0
    %965 = vmatpush1.msra.mxu0 0.0
    %966 = vmatprep.subr.mxu0 0.0
    %967 = vmatpush1.msra.mxu0 0.0
    %968 = vmatprep.subr.mxu0 0.0
    %969 = vmatpush1.msra.mxu0 0.0
    %970 = vmatprep.subr.mxu0 0.0
    %971 = vmatpush1.msra.mxu0 0.0
    %972 = vmatprep.subr.mxu0 0.0
    %973 = vmatpush1.msra.mxu0 0.0
    %974 = vmatprep.subr.mxu0 0.0
    %975 = vmatpush1.msra.mxu0 0.0
    %976 = vmatprep.subr.mxu0 0.0
    %977 = vmatpush1.msra.mxu0 0.0
    %978 = vmatprep.subr.mxu0 0.0
    %979 = vmatpush1.msra.mxu0 0.0
    %980 = vmatprep.mubr.f32.mxu0 0.0
    %981 = vmatmul.mubr.f32.gmra.mrb[0].mxu0 %v865
    %v982 = vpop.f32.mrb[0].mxu0
    %v983 = vadd.f32 %v909, %v982
    %v984 = vpop.f32.mrb[0].mxu0
    %v985 = vadd.f32 %v913, %v984
    %986 = vdwg.mxu0
    %v987 = vxor.u32 %v983, 2147483648
    %v988 = vxor.u32 %v985, 2147483648
    %v989 = vmul.f32 %v987, 1.442695
    %v990 = vpow.pop %v989
    %v991 = vmul.f32 %v988, 1.442695
    %v992 = vpow.pop %v991
    %v993 = vadd.f32 %v990, 1.0
    %v994 = vadd.f32 %v992, 1.0
    %v995 = vrcp.pop %v993
    %v996 = vmul.f32 1.0, %v995
    %v997 = vrcp.pop %v994
    %v998 = vmul.f32 1.0, %v997
    %s999 = scalar_lea.vmem [#allocation7], 1024
    %v1000 = vld [vmem:[%s999] sm:$0xff]
    %v1001 = vld [vmem:[%s999 + $0x8] sm:$0xff]
    %v1002 = vld [vmem:[%s999 + $0x10] sm:$0xff]
    %v1003 = vld [vmem:[%s999 + $0x18] sm:$0xff]
    %v1004 = vld [vmem:[%s999 + $0x20] sm:$0xff]
    %v1005 = vld [vmem:[%s999 + $0x28] sm:$0xff]
    %v1006 = vld [vmem:[%s999 + $0x30] sm:$0xff]
    %v1007 = vld [vmem:[%s999 + $0x38] sm:$0xff]
    %v1008 = vld [vmem:[%s999 + $0x40] sm:$0xff]
    %v1009 = vld [vmem:[%s999 + $0x48] sm:$0xff]
    %v1010 = vld [vmem:[%s999 + $0x50] sm:$0xff]
    %v1011 = vld [vmem:[%s999 + $0x58] sm:$0xff]
    %v1012 = vld [vmem:[%s999 + $0x60] sm:$0xff]
    %v1013 = vld [vmem:[%s999 + $0x68] sm:$0xff]
    %v1014 = vld [vmem:[%s999 + $0x70] sm:$0xff]
    %v1015 = vld [vmem:[%s999 + $0x78] sm:$0xff]
    %v1016 = vld [vmem:[%s999 + $0x80] sm:$0xff]
    %v1017 = vld [vmem:[%s999 + $0x88] sm:$0xff]
    %v1018 = vld [vmem:[%s999 + $0x90] sm:$0xff]
    %v1019 = vld [vmem:[%s999 + $0x98] sm:$0xff]
    %v1020 = vld [vmem:[%s999 + $0xa0] sm:$0xff]
    %v1021 = vld [vmem:[%s999 + $0xa8] sm:$0xff]
    %v1022 = vld [vmem:[%s999 + $0xb0] sm:$0xff]
    %v1023 = vld [vmem:[%s999 + $0xb8] sm:$0xff]
    %v1024 = vld [vmem:[%s999 + $0xc0] sm:$0xff]
    %v1025 = vld [vmem:[%s999 + $0xc8] sm:$0xff]
    %v1026 = vld [vmem:[%s999 + $0xd0] sm:$0xff]
    %v1027 = vld [vmem:[%s999 + $0xd8] sm:$0xff]
    %v1028 = vld [vmem:[%s999 + $0xe0] sm:$0xff]
    %v1029 = vld [vmem:[%s999 + $0xe8] sm:$0xff]
    %v1030 = vld [vmem:[%s999 + $0xf0] sm:$0xff]
    %v1031 = vld [vmem:[%s999 + $0xf8] sm:$0xff]
    %v1032 = vld [vmem:[%s999 + $0x100] sm:$0xff]
    %v1033 = vld [vmem:[%s999 + $0x108] sm:$0xff]
    %v1034 = vld [vmem:[%s999 + $0x110] sm:$0xff]
    %v1035 = vld [vmem:[%s999 + $0x118] sm:$0xff]
    %v1036 = vld [vmem:[%s999 + $0x120] sm:$0xff]
    %v1037 = vld [vmem:[%s999 + $0x128] sm:$0xff]
    %v1038 = vld [vmem:[%s999 + $0x130] sm:$0xff]
    %v1039 = vld [vmem:[%s999 + $0x138] sm:$0xff]
    %v1040 = vld [vmem:[%s999 + $0x140] sm:$0xff]
    %v1041 = vld [vmem:[%s999 + $0x148] sm:$0xff]
    %v1042 = vld [vmem:[%s999 + $0x150] sm:$0xff]
    %v1043 = vld [vmem:[%s999 + $0x158] sm:$0xff]
    %v1044 = vld [vmem:[%s999 + $0x160] sm:$0xff]
    %v1045 = vld [vmem:[%s999 + $0x168] sm:$0xff]
    %v1046 = vld [vmem:[%s999 + $0x170] sm:$0xff]
    %v1047 = vld [vmem:[%s999 + $0x178] sm:$0xff]
    %v1048 = vld [vmem:[%s999 + $0x180] sm:$0xff]
    %v1049 = vld [vmem:[%s999 + $0x188] sm:$0xff]
    %v1050 = vld [vmem:[%s999 + $0x190] sm:$0xff]
    %v1051 = vld [vmem:[%s999 + $0x198] sm:$0xff]
    %v1052 = vld [vmem:[%s999 + $0x1a0] sm:$0xff]
    %v1053 = vld [vmem:[%s999 + $0x1a8] sm:$0xff]
    %v1054 = vld [vmem:[%s999 + $0x1b0] sm:$0xff]
    %v1055 = vld [vmem:[%s999 + $0x1b8] sm:$0xff]
    %v1056 = vld [vmem:[%s999 + $0x1c0] sm:$0xff]
    %v1057 = vld [vmem:[%s999 + $0x1c8] sm:$0xff]
    %v1058 = vld [vmem:[%s999 + $0x1d0] sm:$0xff]
    %v1059 = vld [vmem:[%s999 + $0x1d8] sm:$0xff]
    %v1060 = vld [vmem:[%s999 + $0x1e0] sm:$0xff]
    %v1061 = vld [vmem:[%s999 + $0x1e8] sm:$0xff]
    %v1062 = vld [vmem:[%s999 + $0x1f0] sm:$0xff]
    %v1063 = vld [vmem:[%s999 + $0x1f8] sm:$0xff]
    %s1064 = scalar_lea.vmem %s5, 4
    %v1065 = vld [vmem:[%s1064] sm:$0x3]
    %v1067 = vlaneseq
    %v1068 = vshrl.u32 %v1067, 7
    %v1069 = vsub.s32 0, %v1068
    %v1070 = vrot.slane %v1065, %v1069
    %v1071 = vlaneseq
    %v1072 = vshrl.u32 %v1071, 7
    %v1073 = vsub.s32 1, %v1072
    %v1074 = vrot.slane %v1065, %v1073
    %1077 = vmatprep.subr.mxu0 %v1001
    %1078 = vmatpush1.msra.mxu0 %v1000
    %1079 = vmatprep.subr.mxu0 %v1003
    %1080 = vmatpush1.msra.mxu0 %v1002
    %1081 = vmatprep.subr.mxu0 %v1005
    %1082 = vmatpush1.msra.mxu0 %v1004
    %1083 = vmatprep.subr.mxu0 %v1007
    %1084 = vmatpush1.msra.mxu0 %v1006
    %1085 = vmatprep.subr.mxu0 %v1009
    %1086 = vmatpush1.msra.mxu0 %v1008
    %1087 = vmatprep.subr.mxu0 %v1011
    %1088 = vmatpush1.msra.mxu0 %v1010
    %1089 = vmatprep.subr.mxu0 %v1013
    %1090 = vmatpush1.msra.mxu0 %v1012
    %1091 = vmatprep.subr.mxu0 %v1015
    %1092 = vmatpush1.msra.mxu0 %v1014
    %1093 = vmatprep.subr.mxu0 %v1017
    %1094 = vmatpush1.msra.mxu0 %v1016
    %1095 = vmatprep.subr.mxu0 %v1019
    %1096 = vmatpush1.msra.mxu0 %v1018
    %1097 = vmatprep.subr.mxu0 %v1021
    %1098 = vmatpush1.msra.mxu0 %v1020
    %1099 = vmatprep.subr.mxu0 %v1023
    %1100 = vmatpush1.msra.mxu0 %v1022
    %1101 = vmatprep.subr.mxu0 %v1025
    %1102 = vmatpush1.msra.mxu0 %v1024
    %1103 = vmatprep.subr.mxu0 %v1027
    %1104 = vmatpush1.msra.mxu0 %v1026
    %1105 = vmatprep.subr.mxu0 %v1029
    %1106 = vmatpush1.msra.mxu0 %v1028
    %1107 = vmatprep.subr.mxu0 %v1031
    %1108 = vmatpush1.msra.mxu0 %v1030
    %1109 = vmatprep.subr.mxu0 %v1033
    %1110 = vmatpush1.msra.mxu0 %v1032
    %1111 = vmatprep.subr.mxu0 %v1035
    %1112 = vmatpush1.msra.mxu0 %v1034
    %1113 = vmatprep.subr.mxu0 %v1037
    %1114 = vmatpush1.msra.mxu0 %v1036
    %1115 = vmatprep.subr.mxu0 %v1039
    %1116 = vmatpush1.msra.mxu0 %v1038
    %1117 = vmatprep.subr.mxu0 %v1041
    %1118 = vmatpush1.msra.mxu0 %v1040
    %1119 = vmatprep.subr.mxu0 %v1043
    %1120 = vmatpush1.msra.mxu0 %v1042
    %1121 = vmatprep.subr.mxu0 %v1045
    %1122 = vmatpush1.msra.mxu0 %v1044
    %1123 = vmatprep.subr.mxu0 %v1047
    %1124 = vmatpush1.msra.mxu0 %v1046
    %1125 = vmatprep.subr.mxu0 %v1049
    %1126 = vmatpush1.msra.mxu0 %v1048
    %1127 = vmatprep.subr.mxu0 %v1051
    %1128 = vmatpush1.msra.mxu0 %v1050
    %1129 = vmatprep.subr.mxu0 %v1053
    %1130 = vmatpush1.msra.mxu0 %v1052
    %1131 = vmatprep.subr.mxu0 %v1055
    %1132 = vmatpush1.msra.mxu0 %v1054
    %1133 = vmatprep.subr.mxu0 %v1057
    %1134 = vmatpush1.msra.mxu0 %v1056
    %1135 = vmatprep.subr.mxu0 %v1059
    %1136 = vmatpush1.msra.mxu0 %v1058
    %1137 = vmatprep.subr.mxu0 %v1061
    %1138 = vmatpush1.msra.mxu0 %v1060
    %1139 = vmatprep.subr.mxu0 %v1063
    %1140 = vmatpush1.msra.mxu0 %v1062
    %1141 = vmatprep.mubr.f32.mxu0 %v998
    %1142 = vmatmul.mubr.f32.gmra.mrb[0].mxu0 %v996
    %v1143 = vpop.f32.mrb[0].mxu0
    %v1144 = vadd.f32 %v1070, %v1143
    %v1145 = vpop.f32.mrb[0].mxu0
    %v1146 = vadd.f32 %v1074, %v1145
    %1147 = vdwg.mxu0
    %v1148 = vxor.u32 %v1144, 2147483648
    %v1149 = vxor.u32 %v1146, 2147483648
    %v1150 = vmul.f32 %v1148, 1.442695
    %v1151 = vpow.pop %v1150
    %v1152 = vmul.f32 %v1149, 1.442695
    %v1153 = vpow.pop %v1152
    %v1154 = vadd.f32 %v1151, 1.0
    %v1155 = vadd.f32 %v1153, 1.0
    %v1156 = vrcp.pop %v1154
    %v1157 = vmul.f32 1.0, %v1156
    %v1158 = vrcp.pop %v1155
    %v1159 = vmul.f32 1.0, %v1158
    %s1160 = scalar_lea.vmem [#allocation9], 512
    %v1161 = vld [vmem:[%s1160] sm:$0xff]
    %v1162 = vld [vmem:[%s1160 + $0x8] sm:$0xff]
    %v1163 = vld [vmem:[%s1160 + $0x10] sm:$0xff]
    %v1164 = vld [vmem:[%s1160 + $0x18] sm:$0xff]
    %v1165 = vld [vmem:[%s1160 + $0x20] sm:$0xff]
    %v1166 = vld [vmem:[%s1160 + $0x28] sm:$0xff]
    %v1167 = vld [vmem:[%s1160 + $0x30] sm:$0xff]
    %v1168 = vld [vmem:[%s1160 + $0x38] sm:$0xff]
    %v1169 = vld [vmem:[%s1160 + $0x40] sm:$0xff]
    %v1170 = vld [vmem:[%s1160 + $0x48] sm:$0xff]
    %v1171 = vld [vmem:[%s1160 + $0x50] sm:$0xff]
    %v1172 = vld [vmem:[%s1160 + $0x58] sm:$0xff]
    %v1173 = vld [vmem:[%s1160 + $0x60] sm:$0xff]
    %v1174 = vld [vmem:[%s1160 + $0x68] sm:$0xff]
    %v1175 = vld [vmem:[%s1160 + $0x70] sm:$0xff]
    %v1176 = vld [vmem:[%s1160 + $0x78] sm:$0xff]
    %v1177 = vld [vmem:[%s1160 + $0x80] sm:$0xff]
    %v1178 = vld [vmem:[%s1160 + $0x88] sm:$0xff]
    %v1179 = vld [vmem:[%s1160 + $0x90] sm:$0xff]
    %v1180 = vld [vmem:[%s1160 + $0x98] sm:$0xff]
    %v1181 = vld [vmem:[%s1160 + $0xa0] sm:$0xff]
    %v1182 = vld [vmem:[%s1160 + $0xa8] sm:$0xff]
    %v1183 = vld [vmem:[%s1160 + $0xb0] sm:$0xff]
    %v1184 = vld [vmem:[%s1160 + $0xb8] sm:$0xff]
    %v1185 = vld [vmem:[%s1160 + $0xc0] sm:$0xff]
    %v1186 = vld [vmem:[%s1160 + $0xc8] sm:$0xff]
    %v1187 = vld [vmem:[%s1160 + $0xd0] sm:$0xff]
    %v1188 = vld [vmem:[%s1160 + $0xd8] sm:$0xff]
    %v1189 = vld [vmem:[%s1160 + $0xe0] sm:$0xff]
    %v1190 = vld [vmem:[%s1160 + $0xe8] sm:$0xff]
    %v1191 = vld [vmem:[%s1160 + $0xf0] sm:$0xff]
    %v1192 = vld [vmem:[%s1160 + $0xf8] sm:$0xff]
    %1193 = vmatprep.subr.mxu0 0.0
    %1194 = vmatpush1.msra.mxu0 %v1161
    %1195 = vmatprep.subr.mxu0 0.0
    %1196 = vmatpush1.msra.mxu0 %v1162
    %1197 = vmatprep.subr.mxu0 0.0
    %1198 = vmatpush1.msra.mxu0 %v1163
    %1199 = vmatprep.subr.mxu0 0.0
    %1200 = vmatpush1.msra.mxu0 %v1164
    %1201 = vmatprep.subr.mxu0 0.0
    %1202 = vmatpush1.msra.mxu0 %v1165
    %1203 = vmatprep.subr.mxu0 0.0
    %1204 = vmatpush1.msra.mxu0 %v1166
    %1205 = vmatprep.subr.mxu0 0.0
    %1206 = vmatpush1.msra.mxu0 %v1167
    %1207 = vmatprep.subr.mxu0 0.0
    %1208 = vmatpush1.msra.mxu0 %v1168
    %1209 = vmatprep.subr.mxu0 0.0
    %1210 = vmatpush1.msra.mxu0 %v1169
    %1211 = vmatprep.subr.mxu0 0.0
    %1212 = vmatpush1.msra.mxu0 %v1170
    %1213 = vmatprep.subr.mxu0 0.0
    %1214 = vmatpush1.msra.mxu0 %v1171
    %1215 = vmatprep.subr.mxu0 0.0
    %1216 = vmatpush1.msra.mxu0 %v1172
    %1217 = vmatprep.subr.mxu0 0.0
    %1218 = vmatpush1.msra.mxu0 %v1173
    %1219 = vmatprep.subr.mxu0 0.0
    %1220 = vmatpush1.msra.mxu0 %v1174
    %1221 = vmatprep.subr.mxu0 0.0
    %1222 = vmatpush1.msra.mxu0 %v1175
    %1223 = vmatprep.subr.mxu0 0.0
    %1224 = vmatpush1.msra.mxu0 %v1176
    %1225 = vmatprep.subr.mxu0 0.0
    %1226 = vmatpush1.msra.mxu0 %v1177
    %1227 = vmatprep.subr.mxu0 0.0
    %1228 = vmatpush1.msra.mxu0 %v1178
    %1229 = vmatprep.subr.mxu0 0.0
    %1230 = vmatpush1.msra.mxu0 %v1179
    %1231 = vmatprep.subr.mxu0 0.0
    %1232 = vmatpush1.msra.mxu0 %v1180
    %1233 = vmatprep.subr.mxu0 0.0
    %1234 = vmatpush1.msra.mxu0 %v1181
    %1235 = vmatprep.subr.mxu0 0.0
    %1236 = vmatpush1.msra.mxu0 %v1182
    %1237 = vmatprep.subr.mxu0 0.0
    %1238 = vmatpush1.msra.mxu0 %v1183
    %1239 = vmatprep.subr.mxu0 0.0
    %1240 = vmatpush1.msra.mxu0 %v1184
    %1241 = vmatprep.subr.mxu0 0.0
    %1242 = vmatpush1.msra.mxu0 %v1185
    %1243 = vmatprep.subr.mxu0 0.0
    %1244 = vmatpush1.msra.mxu0 %v1186
    %1245 = vmatprep.subr.mxu0 0.0
    %1246 = vmatpush1.msra.mxu0 %v1187
    %1247 = vmatprep.subr.mxu0 0.0
    %1248 = vmatpush1.msra.mxu0 %v1188
    %1249 = vmatprep.subr.mxu0 0.0
    %1250 = vmatpush1.msra.mxu0 %v1189
    %1251 = vmatprep.subr.mxu0 0.0
    %1252 = vmatpush1.msra.mxu0 %v1190
    %1253 = vmatprep.subr.mxu0 0.0
    %1254 = vmatpush1.msra.mxu0 %v1191
    %1255 = vmatprep.subr.mxu0 0.0
    %1256 = vmatpush1.msra.mxu0 %v1192
    %1257 = vmatprep.mubr.f32.mxu0 %v1159
    %1258 = vmatmul.mubr.f32.gmra.mrb[0].mxu0 %v1157
    %v1259 = vpop.f32.mrb[0].mxu0
    %v1260 = vadd.f32 0.0, %v1259
    %v1261 = vpop.f32.mrb[0].mxu0
    %1262 = vdwg.mxu0
    %v1263 = vadd.f32 %v865, %v1260
    %s1264 = sld [smem:[#allocation2 + $0x2]]
    %v1265 = vstv %s1264
    %v1266 = vmul.f32 %v1265, %v1263
    %v1267 = vadd.f32 %v869, %v1266
    %1268 = vst [vmem:[#allocation10] sm:$0x3] %v1267
    // Predicated region
    $region46: #{tpu_custom_call.1} parent=1 // pred_check
      _
    $region47: #{tpu_custom_call.1} parent=1 // pred_check_branch
      %1270 = sbr.rel (0) target = $region49
    $region48: #{tpu_custom_call.1} parent=1 // pred_region
      %s1272 = ssub.s32 32, 32
      %1273 = vsyncadd [#allocation4], %s1272
      %s1275 = sshll.u32 [#allocation10], 4
      %s1276 = int_to_ptr.vmem [resolvable:$true] %s1275
      %1278 = dma.vmem_to_hbm [thread:$0]  %s1276, 32, %s7, [#allocation4]
    $region49: #{tpu_custom_call.1} parent=1 // pred_fallthru
      _
    // Predicated region
    $region50: #{tpu_custom_call.1} parent=1 // pred_check
      _
    $region51: #{tpu_custom_call.1} parent=1 // pred_check_branch
      %1280 = sbr.rel (0) target = $region53
    $region52: #{tpu_custom_call.1} parent=1 // pred_region
      %1281 = dma.done [#allocation4], 32
    $region53: #{tpu_custom_call.1} parent=1 // pred_fallthru
      _
    %1282 = vsyncpa [#allocation3], 1
    %1283 = vsyncpa [#allocation8], 1
    %1284 = vsyncpa [#allocation4], 1
    %1285 = vsyncpa [#allocation5], 1

</llo_original>
